<compile_context>
chip_gen: v7x
topology: tpu7x:2x2x1
jax: 0.10.0
libtpu: 0.0.40
codegen_flags: <defaults>
</compile_context>

<pallas_src>
import math

import jax
import jax.numpy as jnp
from jax import lax
from jax.experimental import pallas as pl
from jax.experimental.pallas import tpu as pltpu

# ----------------------------- model dimensions ------------------------------
B = 2           # batch
S = 8           # sequence length
H = 32          # hidden size   (stand-in for 768)
NH = 2          # attention heads
HD = H // NH    # head dim
HP = 128        # lane-padded per-head width (head slices are 128-aligned)
QKV_P = 3 * NH * HP   # padded fused QKV output width
F = 64          # FFN intermediate size
L = 2           # transformer layers
C = 7           # num_classes
CP = 128        # lane-padded classifier width (real C cols sliced in wrapper)
V = 50          # vocab size
BS = B * S
DR_RATE = 0.5   # dropout rate (identity in eval / inference mode)


def _layernorm(x, g, b, eps=1e-12):
    mu = jnp.mean(x, axis=-1, keepdims=True)
    var = jnp.mean((x - mu) ** 2, axis=-1, keepdims=True)
    return (x - mu) * lax.rsqrt(var + eps) * g + b


# ------------------------------- Pallas kernel --------------------------------
def bert_classifier_kernel(
    valid_ref,   # (B,)             int32, SMEM  valid lengths
    x_ref,       # (B*S, H)         f32          embedded tokens (batch fused)
    wqkv_ref,    # (L, H, QKV_P)    bf16  head-major padded [Qh0..|Kh0..|Vh0..],
                 #                        Q columns pre-scaled by 1/sqrt(HD)
    bqkv_ref,    # (L, QKV_P)       f32   (Q slice pre-scaled)
    wo_ref,      # (L, NH*HP, H)    bf16  rows h*HP..h*HP+HD hold head h's Wo
    bo_ref,      # (L, H)           f32
    ln1g_ref,    # (L, H)           f32
    ln1b_ref,    # (L, H)           f32
    wff1_ref,    # (L, H, F)        bf16
    bff1_ref,    # (L, F)           f32
    wff2_ref,    # (L, F, H)        bf16
    bff2_ref,    # (L, H)           f32
    ln2g_ref,    # (L, H)           f32
    ln2b_ref,    # (L, H)           f32
    wp_ref,      # (H, H)           bf16  pooler
    bp_ref,      # (1, H)           f32
    wc_ref,      # (H, CP)          bf16  classifier, zero cols C..CP-1
    bc_ref,      # (1, CP)          f32
    out_ref,     # (B*S, CP)        f32   lane+sublane-dense padded logits
):
    x = x_ref[...]                              # (BS, H) f32 residual stream
    x_bf = x.astype(jnp.bfloat16)               # single bf16 shadow

    # --- block-diagonal additive attention mask, hoisted out of all loops ---
    # mask[i, j] = 0 if (i, j) are in the same sequence AND j is a valid key
    # position of that sequence, else -1e9.  (Key padding mask == PyTorch
    # gen_attention_mask semantics; padded query rows are never used.)
    row = lax.broadcasted_iota(jnp.int32, (BS, BS), 0)
    col = lax.broadcasted_iota(jnp.int32, (BS, BS), 1)
    mask = jnp.full((BS, BS), -1e9, dtype=jnp.float32)
    for b in range(B):
        in_b_row = (row >= b * S) & (row < (b + 1) * S)
        in_b_col = (col >= b * S) & (col < (b + 1) * S)
        valid_key = col < (b * S + valid_ref[b])            # SMEM scalar read
        mask = jnp.where(in_b_row & in_b_col & valid_key, 0.0, mask)

    qk_dims = (((1,), (1,)), ((), ()))          # q @ k^T, no materialized k.T

    for l in range(L):
        # --- fused QKV projection (one matmul; per-head cols padded to 128) ---
        qkv = jnp.dot(x_bf, wqkv_ref[l],
                      preferred_element_type=jnp.float32) + bqkv_ref[l]
        qkv_bf = qkv.astype(jnp.bfloat16)       # one cast; all heads slice this

        wo_l = wo_ref[l]                        # (NH*HP, H)
        attn = jnp.zeros((BS, H), jnp.float32)
        for hh in range(NH):
            # 128-aligned lane-tile slices -> no relayouts
            q = qkv_bf[:, hh * HP:(hh + 1) * HP]                     # (BS, HP)
            k = qkv_bf[:, (NH + hh) * HP:(NH + hh + 1) * HP]         # (BS, HP)
            v = qkv_bf[:, (2 * NH + hh) * HP:(2 * NH + hh + 1) * HP]  # (BS, HP)

            # one batched score matmul for all sequences of this head
            scores = lax.dot_general(q, k, qk_dims,
                                     preferred_element_type=jnp.float32)  # (BS, BS)
            scores = scores + mask

            # explicit softmax; reciprocal on the EUP slot
            m = jnp.max(scores, axis=-1, keepdims=True)
            e = jnp.exp(scores - m)
            p = e * pl.reciprocal(jnp.sum(e, axis=-1, keepdims=True), approx=True)

            ctx = jnp.dot(p.astype(jnp.bfloat16), v,
                          preferred_element_type=jnp.float32)        # (BS, HP)
            # fold the head concat into the output projection (accumulate)
            attn = attn + jnp.dot(ctx.astype(jnp.bfloat16),
                                  wo_l[hh * HP:(hh + 1) * HP, :],
                                  preferred_element_type=jnp.float32)
        attn = attn + bo_ref[l]
        x = _layernorm(x + attn, ln1g_ref[l], ln1b_ref[l])
        x_bf = x.astype(jnp.bfloat16)

        # --- feed forward ---
        h1 = jnp.dot(x_bf, wff1_ref[l],
                     preferred_element_type=jnp.float32) + bff1_ref[l]
        # TODO(synk): PyTorch BERT uses exact erf GELU; tanh-approx GELU kept
        # here to guarantee Mosaic lowering (~1e-3 relative deviation).
        h1 = jax.nn.gelu(h1, approximate=True)
        h2 = jnp.dot(h1.astype(jnp.bfloat16), wff2_ref[l],
                     preferred_element_type=jnp.float32) + bff2_ref[l]
        x = _layernorm(x + h2, ln2g_ref[l], ln2b_ref[l])
        x_bf = x.astype(jnp.bfloat16)

    # --- BERT pooler + classifier, evaluated over ALL rows so the output
    #     store is a full unmasked (BS, CP) tile.  CLS rows (0, S, 2S, ...)
    #     are picked out in the wrapper with a strided slice. ---
    pooled = jnp.tanh(jnp.dot(x_bf, wp_ref[...],
                              preferred_element_type=jnp.float32) + bp_ref[...])

    # TODO(synk): dropout(p=dr_rate) is the identity in eval/inference mode;
    # training-mode RNG dropout omitted.

    out_ref[...] = jnp.dot(pooled.astype(jnp.bfloat16), wc_ref[...],
                           preferred_element_type=jnp.float32) + bc_ref[...]


# ------------------------------- host wrapper ---------------------------------
def bert_classifier_forward(token_ids, valid_length, segment_ids, params):
    # ---- glue: embedding lookups + embedding LayerNorm (plain JAX, f32) ----
    tok_e = params["tok_emb"][token_ids]                     # (B, S, H)
    seg_e = params["seg_emb"][segment_ids]                   # (B, S, H)
    pos_e = params["pos_emb"][jnp.arange(S)][None, :, :]     # (1, S, H)
    x_emb = _layernorm(tok_e + seg_e + pos_e,
                       params["ln0_g"], params["ln0_b"])
    x_emb = x_emb.reshape(BS, H).astype(jnp.float32)         # f32 into the kernel

    valid = valid_length.astype(jnp.int32).reshape(B)        # (B,) scalars -> SMEM

    smem = pl.BlockSpec(memory_space=pltpu.MemorySpace.SMEM)
    vmem = pl.BlockSpec(memory_space=pltpu.MemorySpace.VMEM)

    fn = pl.pallas_call(
        bert_classifier_kernel,
        out_shape=jax.ShapeDtypeStruct((BS, CP), jnp.float32),
        in_specs=[smem] + [vmem] * 17,
        out_specs=vmem,
    )
    padded_logits = fn(
        valid, x_emb,
        params["wqkv"], params["bqkv"],
        params["wo"], params["bo"],
        params["ln1_g"], params["ln1_b"],
        params["wff1"], params["bff1"],
        params["wff2"], params["bff2"],
        params["ln2_g"], params["ln2_b"],
        params["wp"], params["bp"],
        params["wc_pad"], params["bc_pad"],
    )
    # CLS rows (one per sequence) and the C real classes.
    return padded_logits[0::S, :C]


# ------------------------------ parameter init ---------------------------------
def init_params(key):
    ks = jax.random.split(key, 20)
    n = lambda k, shape: (0.02 * jax.random.normal(k, shape)).astype(jnp.float32)

    # raw (PyTorch-layout) encoder weights, with real (non-zero) biases
    wq, wk, wv = n(ks[0], (L, H, H)), n(ks[1], (L, H, H)), n(ks[2], (L, H, H))
    bq, bk, bv = n(ks[3], (L, H)), n(ks[4], (L, H)), n(ks[5], (L, H))
    wo, bo = n(ks[6], (L, H, H)), n(ks[7], (L, H))
    wff1, bff1 = n(ks[8], (L, H, F)), n(ks[9], (L, F))
    wff2, bff2 = n(ks[10], (L, F, H)), n(ks[11], (L, H))
    wp, bp = n(ks[12], (H, H)), n(ks[13], (1, H))
    wc, bc = n(ks[14], (H, C)), n(ks[15], (1, C))

    # pack Q/K/V head-major into 128-lane-padded blocks; fold 1/sqrt(HD) into
    # BOTH the Q weight columns and the Q bias slice (single place, loader-safe)
    scale = 1.0 / math.sqrt(HD)
    wqkv_pad = jnp.zeros((L, H, QKV_P), jnp.float32)
    bqkv_pad = jnp.zeros((L, QKV_P), jnp.float32)
    wo_pad = jnp.zeros((L, NH * HP, H), jnp.float32)
    for h in range(NH):
        src = slice(h * HD, (h + 1) * HD)
        cq, ck, cv = h * HP, (NH + h) * HP, (2 * NH + h) * HP
        wqkv_pad = wqkv_pad.at[:, :, cq:cq + HD].set(wq[:, :, src] * scale)
        wqkv_pad = wqkv_pad.at[:, :, ck:ck + HD].set(wk[:, :, src])
        wqkv_pad = wqkv_pad.at[:, :, cv:cv + HD].set(wv[:, :, src])
        bqkv_pad = bqkv_pad.at[:, cq:cq + HD].set(bq[:, src] * scale)
        bqkv_pad = bqkv_pad.at[:, ck:ck + HD].set(bk[:, src])
        bqkv_pad = bqkv_pad.at[:, cv:cv + HD].set(bv[:, src])
        wo_pad = wo_pad.at[:, h * HP:h * HP + HD, :].set(wo[:, src, :])

    # classifier, zero-padded to CP=128 lanes for a lane-dense output store
    wc_pad = jnp.zeros((H, CP), jnp.float32).at[:, :C].set(wc)
    bc_pad = jnp.zeros((1, CP), jnp.float32).at[:, :C].set(bc)

    return {
        "tok_emb": n(ks[16], (V, H)),
        "seg_emb": n(ks[17], (2, H)),
        "pos_emb": n(ks[18], (S, H)),
        "ln0_g": jnp.ones((H,), jnp.float32),
        "ln0_b": jnp.zeros((H,), jnp.float32),
        "wqkv": wqkv_pad.astype(jnp.bfloat16),
        "bqkv": bqkv_pad,
        "wo": wo_pad.astype(jnp.bfloat16),
        "bo": bo,
        "ln1_g": jnp.ones((L, H), jnp.float32),
        "ln1_b": jnp.zeros((L, H), jnp.float32),
        "wff1": wff1.astype(jnp.bfloat16),
        "bff1": bff1,
        "wff2": wff2.astype(jnp.bfloat16),
        "bff2": bff2,
        "ln2_g": jnp.ones((L, H), jnp.float32),
        "ln2_b": jnp.zeros((L, H), jnp.float32),
        "wp": wp.astype(jnp.bfloat16),
        "bp": bp,
        "wc_pad": wc_pad.astype(jnp.bfloat16),
        "bc_pad": bc_pad,
    }


if __name__ == "__main__":
    key = jax.random.PRNGKey(0)
    kp, kt, ks_, kv = jax.random.split(key, 4)

    params = init_params(kp)
    token_ids = jax.random.randint(kt, (B, S), 0, V, dtype=jnp.int32)
    segment_ids = jax.random.randint(ks_, (B, S), 0, 2, dtype=jnp.int32)
    valid_length = jax.random.randint(kv, (B,), 3, S + 1, dtype=jnp.int32)

    logits = bert_classifier_forward(token_ids, valid_length, segment_ids, params)
    logits = jax.block_until_ready(logits)

    assert logits.shape == (B, C)
    assert bool(jnp.all(jnp.isfinite(logits)))
    print("KERNEL_OK")
</pallas_src>

<mosaic_0001>
module attributes {stable_mosaic.version = 11 : i64} {
  func.func @bert_classifier_kernel(%arg0: memref<2xi32, #tpu.memory_space<smem>>, %arg1: memref<16x32xf32, #tpu.memory_space<vmem>>, %arg2: memref<2x32x768xbf16, #tpu.memory_space<vmem>>, %arg3: memref<2x768xf32, #tpu.memory_space<vmem>>, %arg4: memref<2x256x32xbf16, #tpu.memory_space<vmem>>, %arg5: memref<2x32xf32, #tpu.memory_space<vmem>>, %arg6: memref<2x32xf32, #tpu.memory_space<vmem>>, %arg7: memref<2x32xf32, #tpu.memory_space<vmem>>, %arg8: memref<2x32x64xbf16, #tpu.memory_space<vmem>>, %arg9: memref<2x64xf32, #tpu.memory_space<vmem>>, %arg10: memref<2x64x32xbf16, #tpu.memory_space<vmem>>, %arg11: memref<2x32xf32, #tpu.memory_space<vmem>>, %arg12: memref<2x32xf32, #tpu.memory_space<vmem>>, %arg13: memref<2x32xf32, #tpu.memory_space<vmem>>, %arg14: memref<32x32xbf16, #tpu.memory_space<vmem>>, %arg15: memref<1x32xf32, #tpu.memory_space<vmem>>, %arg16: memref<32x128xbf16, #tpu.memory_space<vmem>>, %arg17: memref<1x128xf32, #tpu.memory_space<vmem>>, %arg18: memref<16x128xf32, #tpu.memory_space<vmem>>) attributes {dimension_semantics = [], scalar_prefetch = 0 : i64, scratch_operands = 0 : i64, tpu.core_type = #tpu.core_type<tc>} {
    %c0 = arith.constant 0 : index
    %c0_0 = arith.constant 0 : index
    %0 = vector.load %arg1[%c0, %c0_0] : memref<16x32xf32, #tpu.memory_space<vmem>>, vector<16x32xf32>
    %1 = arith.truncf %0 : vector<16x32xf32> to vector<16x32xbf16>
    %2 = tpu.iota {dimensions = array<i32: 0>} : vector<16x16xi32>
    %3 = tpu.iota {dimensions = array<i32: 1>} : vector<16x16xi32>
    %cst = arith.constant -1.000000e+09 : f32
    %4 = vector.broadcast %cst : f32 to vector<16x16xf32>
    %c0_i32 = arith.constant 0 : i32
    %5 = vector.broadcast %c0_i32 : i32 to vector<16x16xi32>
    %6 = arith.cmpi sge, %2, %5 : vector<16x16xi32>
    %c8_i32 = arith.constant 8 : i32
    %7 = vector.broadcast %c8_i32 : i32 to vector<16x16xi32>
    %8 = arith.cmpi slt, %2, %7 : vector<16x16xi32>
    %9 = arith.andi %6, %8 : vector<16x16xi1>
    %c0_i32_1 = arith.constant 0 : i32
    %10 = vector.broadcast %c0_i32_1 : i32 to vector<16x16xi32>
    %11 = arith.cmpi sge, %3, %10 : vector<16x16xi32>
    %c8_i32_2 = arith.constant 8 : i32
    %12 = vector.broadcast %c8_i32_2 : i32 to vector<16x16xi32>
    %13 = arith.cmpi slt, %3, %12 : vector<16x16xi32>
    %14 = arith.andi %11, %13 : vector<16x16xi1>
    %c0_3 = arith.constant 0 : index
    %15 = memref.load %arg0[%c0_3] : memref<2xi32, #tpu.memory_space<smem>>
    %c0_i32_4 = arith.constant 0 : i32
    %16 = arith.addi %c0_i32_4, %15 : i32
    %17 = vector.broadcast %16 : i32 to vector<16x16xi32>
    %18 = arith.cmpi slt, %3, %17 : vector<16x16xi32>
    %19 = arith.andi %9, %14 : vector<16x16xi1>
    %20 = arith.andi %19, %18 : vector<16x16xi1>
    %cst_5 = arith.constant 0.000000e+00 : f32
    %21 = vector.broadcast %cst_5 : f32 to vector<16x16xf32>
    %22 = arith.select %20, %21, %4 : vector<16x16xi1>, vector<16x16xf32>
    %c8_i32_6 = arith.constant 8 : i32
    %23 = vector.broadcast %c8_i32_6 : i32 to vector<16x16xi32>
    %24 = arith.cmpi sge, %2, %23 : vector<16x16xi32>
    %c16_i32 = arith.constant 16 : i32
    %25 = vector.broadcast %c16_i32 : i32 to vector<16x16xi32>
    %26 = arith.cmpi slt, %2, %25 : vector<16x16xi32>
    %27 = arith.andi %24, %26 : vector<16x16xi1>
    %c8_i32_7 = arith.constant 8 : i32
    %28 = vector.broadcast %c8_i32_7 : i32 to vector<16x16xi32>
    %29 = arith.cmpi sge, %3, %28 : vector<16x16xi32>
    %c16_i32_8 = arith.constant 16 : i32
    %30 = vector.broadcast %c16_i32_8 : i32 to vector<16x16xi32>
    %31 = arith.cmpi slt, %3, %30 : vector<16x16xi32>
    %32 = arith.andi %29, %31 : vector<16x16xi1>
    %c1 = arith.constant 1 : index
    %33 = memref.load %arg0[%c1] : memref<2xi32, #tpu.memory_space<smem>>
    %c8_i32_9 = arith.constant 8 : i32
    %34 = arith.addi %c8_i32_9, %33 : i32
    %35 = vector.broadcast %34 : i32 to vector<16x16xi32>
    %36 = arith.cmpi slt, %3, %35 : vector<16x16xi32>
    %37 = arith.andi %27, %32 : vector<16x16xi1>
    %38 = arith.andi %37, %36 : vector<16x16xi1>
    %cst_10 = arith.constant 0.000000e+00 : f32
    %39 = vector.broadcast %cst_10 : f32 to vector<16x16xf32>
    %40 = arith.select %38, %39, %22 : vector<16x16xi1>, vector<16x16xf32>
    %c0_11 = arith.constant 0 : index
    %c0_12 = arith.constant 0 : index
    %c0_13 = arith.constant 0 : index
    %41 = vector.load %arg2[%c0_11, %c0_12, %c0_13] : memref<2x32x768xbf16, #tpu.memory_space<vmem>>, vector<1x32x768xbf16>
    %42 = vector.shape_cast %41 : vector<1x32x768xbf16> to vector<32x768xbf16>
    %cst_14 = arith.constant dense<0.000000e+00> : vector<16x768xf32>
    %43 = tpu.matmul %1, %42, %cst_14 {dimension_numbers = #tpu.dot_dimension_numbers<[1], [0], [0], [1], [0, 0, 1, 1], [], []>} : vector<16x32xbf16>, vector<32x768xbf16>, vector<16x768xf32> -> vector<16x768xf32>
    %c0_15 = arith.constant 0 : index
    %c0_16 = arith.constant 0 : index
    %44 = vector.load %arg3[%c0_15, %c0_16] : memref<2x768xf32, #tpu.memory_space<vmem>>, vector<1x768xf32>
    %45 = vector.shape_cast %44 : vector<1x768xf32> to vector<768xf32>
    %46 = vector.shape_cast %45 : vector<768xf32> to vector<1x768xf32>
    %47 = vector.broadcast %46 : vector<1x768xf32> to vector<16x768xf32>
    %48 = arith.addf %43, %47 : vector<16x768xf32>
    %49 = arith.truncf %48 : vector<16x768xf32> to vector<16x768xbf16>
    %c0_17 = arith.constant 0 : index
    %c0_18 = arith.constant 0 : index
    %c0_19 = arith.constant 0 : index
    %50 = vector.load %arg4[%c0_17, %c0_18, %c0_19] : memref<2x256x32xbf16, #tpu.memory_space<vmem>>, vector<1x256x32xbf16>
    %51 = vector.shape_cast %50 : vector<1x256x32xbf16> to vector<256x32xbf16>
    %cst_20 = arith.constant 0.000000e+00 : f32
    %52 = vector.broadcast %cst_20 : f32 to vector<16x32xf32>
    %53 = vector.extract_strided_slice %49 {offsets = [0, 0], sizes = [16, 128], strides = [1, 1]} : vector<16x768xbf16> to vector<16x128xbf16>
    %54 = vector.extract_strided_slice %49 {offsets = [0, 256], sizes = [16, 128], strides = [1, 1]} : vector<16x768xbf16> to vector<16x128xbf16>
    %55 = vector.extract_strided_slice %49 {offsets = [0, 512], sizes = [16, 128], strides = [1, 1]} : vector<16x768xbf16> to vector<16x128xbf16>
    %cst_21 = arith.constant dense<0.000000e+00> : vector<16x16xf32>
    %56 = tpu.matmul %53, %54, %cst_21 {dimension_numbers = #tpu.dot_dimension_numbers<[1], [1], [0], [0], [0, 0, 1, 0], [], []>} : vector<16x128xbf16>, vector<16x128xbf16>, vector<16x16xf32> -> vector<16x16xf32>
    %57 = arith.addf %56, %40 : vector<16x16xf32>
    %cst_22 = arith.constant dense<0xFF800000> : vector<16xf32>
    %58 = vector.multi_reduction <maximumf>, %57, %cst_22 [1] : vector<16x16xf32> to vector<16xf32>
    %59 = vector.shape_cast %58 : vector<16xf32> to vector<16x1xf32>
    %60 = vector.broadcast %59 : vector<16x1xf32> to vector<16x16xf32>
    %61 = arith.subf %57, %60 : vector<16x16xf32>
    %62 = math.exp %61 : vector<16x16xf32>
    %cst_23 = arith.constant dense<0.000000e+00> : vector<16xf32>
    %63 = vector.multi_reduction <add>, %62, %cst_23 [1] : vector<16x16xf32> to vector<16xf32>
    %64 = vector.shape_cast %63 : vector<16xf32> to vector<16x1xf32>
    %65 = tpu.reciprocal %64 {approx = true} : vector<16x1xf32> -> vector<16x1xf32>
    %66 = vector.broadcast %65 : vector<16x1xf32> to vector<16x16xf32>
    %67 = arith.mulf %62, %66 : vector<16x16xf32>
    %68 = arith.truncf %67 : vector<16x16xf32> to vector<16x16xbf16>
    %cst_24 = arith.constant dense<0.000000e+00> : vector<16x128xf32>
    %69 = tpu.matmul %68, %55, %cst_24 {dimension_numbers = #tpu.dot_dimension_numbers<[1], [0], [0], [1], [0, 0, 1, 1], [], []>} : vector<16x16xbf16>, vector<16x128xbf16>, vector<16x128xf32> -> vector<16x128xf32>
    %70 = arith.truncf %69 : vector<16x128xf32> to vector<16x128xbf16>
    %71 = vector.extract_strided_slice %51 {offsets = [0, 0], sizes = [128, 32], strides = [1, 1]} : vector<256x32xbf16> to vector<128x32xbf16>
    %cst_25 = arith.constant dense<0.000000e+00> : vector<16x32xf32>
    %72 = tpu.matmul %70, %71, %cst_25 {dimension_numbers = #tpu.dot_dimension_numbers<[1], [0], [0], [1], [0, 0, 1, 1], [], []>} : vector<16x128xbf16>, vector<128x32xbf16>, vector<16x32xf32> -> vector<16x32xf32>
    %73 = arith.addf %52, %72 : vector<16x32xf32>
    %74 = vector.extract_strided_slice %49 {offsets = [0, 128], sizes = [16, 128], strides = [1, 1]} : vector<16x768xbf16> to vector<16x128xbf16>
    %75 = vector.extract_strided_slice %49 {offsets = [0, 384], sizes = [16, 128], strides = [1, 1]} : vector<16x768xbf16> to vector<16x128xbf16>
    %76 = vector.extract_strided_slice %49 {offsets = [0, 640], sizes = [16, 128], strides = [1, 1]} : vector<16x768xbf16> to vector<16x128xbf16>
    %cst_26 = arith.constant dense<0.000000e+00> : vector<16x16xf32>
    %77 = tpu.matmul %74, %75, %cst_26 {dimension_numbers = #tpu.dot_dimension_numbers<[1], [1], [0], [0], [0, 0, 1, 0], [], []>} : vector<16x128xbf16>, vector<16x128xbf16>, vector<16x16xf32> -> vector<16x16xf32>
    %78 = arith.addf %77, %40 : vector<16x16xf32>
    %cst_27 = arith.constant dense<0xFF800000> : vector<16xf32>
    %79 = vector.multi_reduction <maximumf>, %78, %cst_27 [1] : vector<16x16xf32> to vector<16xf32>
    %80 = vector.shape_cast %79 : vector<16xf32> to vector<16x1xf32>
    %81 = vector.broadcast %80 : vector<16x1xf32> to vector<16x16xf32>
    %82 = arith.subf %78, %81 : vector<16x16xf32>
    %83 = math.exp %82 : vector<16x16xf32>
    %cst_28 = arith.constant dense<0.000000e+00> : vector<16xf32>
    %84 = vector.multi_reduction <add>, %83, %cst_28 [1] : vector<16x16xf32> to vector<16xf32>
    %85 = vector.shape_cast %84 : vector<16xf32> to vector<16x1xf32>
    %86 = tpu.reciprocal %85 {approx = true} : vector<16x1xf32> -> vector<16x1xf32>
    %87 = vector.broadcast %86 : vector<16x1xf32> to vector<16x16xf32>
    %88 = arith.mulf %83, %87 : vector<16x16xf32>
    %89 = arith.truncf %88 : vector<16x16xf32> to vector<16x16xbf16>
    %cst_29 = arith.constant dense<0.000000e+00> : vector<16x128xf32>
    %90 = tpu.matmul %89, %76, %cst_29 {dimension_numbers = #tpu.dot_dimension_numbers<[1], [0], [0], [1], [0, 0, 1, 1], [], []>} : vector<16x16xbf16>, vector<16x128xbf16>, vector<16x128xf32> -> vector<16x128xf32>
    %91 = arith.truncf %90 : vector<16x128xf32> to vector<16x128xbf16>
    %92 = vector.extract_strided_slice %51 {offsets = [128, 0], sizes = [128, 32], strides = [1, 1]} : vector<256x32xbf16> to vector<128x32xbf16>
    %cst_30 = arith.constant dense<0.000000e+00> : vector<16x32xf32>
    %93 = tpu.matmul %91, %92, %cst_30 {dimension_numbers = #tpu.dot_dimension_numbers<[1], [0], [0], [1], [0, 0, 1, 1], [], []>} : vector<16x128xbf16>, vector<128x32xbf16>, vector<16x32xf32> -> vector<16x32xf32>
    %94 = arith.addf %73, %93 : vector<16x32xf32>
    %c0_31 = arith.constant 0 : index
    %c0_32 = arith.constant 0 : index
    %95 = vector.load %arg5[%c0_31, %c0_32] : memref<2x32xf32, #tpu.memory_space<vmem>>, vector<1x32xf32>
    %96 = vector.shape_cast %95 : vector<1x32xf32> to vector<32xf32>
    %97 = vector.shape_cast %96 : vector<32xf32> to vector<1x32xf32>
    %98 = vector.broadcast %97 : vector<1x32xf32> to vector<16x32xf32>
    %99 = arith.addf %94, %98 : vector<16x32xf32>
    %100 = arith.addf %0, %99 : vector<16x32xf32>
    %c0_33 = arith.constant 0 : index
    %c0_34 = arith.constant 0 : index
    %101 = vector.load %arg6[%c0_33, %c0_34] : memref<2x32xf32, #tpu.memory_space<vmem>>, vector<1x32xf32>
    %102 = vector.shape_cast %101 : vector<1x32xf32> to vector<32xf32>
    %c0_35 = arith.constant 0 : index
    %c0_36 = arith.constant 0 : index
    %103 = vector.load %arg7[%c0_35, %c0_36] : memref<2x32xf32, #tpu.memory_space<vmem>>, vector<1x32xf32>
    %104 = vector.shape_cast %103 : vector<1x32xf32> to vector<32xf32>
    %cst_37 = arith.constant dense<0.000000e+00> : vector<16xf32>
    %105 = vector.multi_reduction <add>, %100, %cst_37 [1] : vector<16x32xf32> to vector<16xf32>
    %106 = vector.shape_cast %105 : vector<16xf32> to vector<16x1xf32>
    %cst_38 = arith.constant 3.200000e+01 : f32
    %107 = vector.broadcast %cst_38 : f32 to vector<16x1xf32>
    %108 = arith.divf %106, %107 : vector<16x1xf32>
    %109 = vector.broadcast %108 : vector<16x1xf32> to vector<16x32xf32>
    %110 = arith.subf %100, %109 : vector<16x32xf32>
    %111 = arith.mulf %110, %110 : vector<16x32xf32>
    %cst_39 = arith.constant dense<0.000000e+00> : vector<16xf32>
    %112 = vector.multi_reduction <add>, %111, %cst_39 [1] : vector<16x32xf32> to vector<16xf32>
    %113 = vector.shape_cast %112 : vector<16xf32> to vector<16x1xf32>
    %cst_40 = arith.constant 3.200000e+01 : f32
    %114 = vector.broadcast %cst_40 : f32 to vector<16x1xf32>
    %115 = arith.divf %113, %114 : vector<16x1xf32>
    %116 = vector.broadcast %108 : vector<16x1xf32> to vector<16x32xf32>
    %117 = arith.subf %100, %116 : vector<16x32xf32>
    %cst_41 = arith.constant 9.99999996E-13 : f32
    %118 = vector.broadcast %cst_41 : f32 to vector<16x1xf32>
    %119 = arith.addf %115, %118 : vector<16x1xf32>
    %120 = math.rsqrt %119 : vector<16x1xf32>
    %121 = vector.broadcast %120 : vector<16x1xf32> to vector<16x32xf32>
    %122 = arith.mulf %117, %121 : vector<16x32xf32>
    %123 = vector.shape_cast %102 : vector<32xf32> to vector<1x32xf32>
    %124 = vector.broadcast %123 : vector<1x32xf32> to vector<16x32xf32>
    %125 = arith.mulf %122, %124 : vector<16x32xf32>
    %126 = vector.shape_cast %104 : vector<32xf32> to vector<1x32xf32>
    %127 = vector.broadcast %126 : vector<1x32xf32> to vector<16x32xf32>
    %128 = arith.addf %125, %127 : vector<16x32xf32>
    %129 = arith.truncf %128 : vector<16x32xf32> to vector<16x32xbf16>
    %c0_42 = arith.constant 0 : index
    %c0_43 = arith.constant 0 : index
    %c0_44 = arith.constant 0 : index
    %130 = vector.load %arg8[%c0_42, %c0_43, %c0_44] : memref<2x32x64xbf16, #tpu.memory_space<vmem>>, vector<1x32x64xbf16>
    %131 = vector.shape_cast %130 : vector<1x32x64xbf16> to vector<32x64xbf16>
    %cst_45 = arith.constant dense<0.000000e+00> : vector<16x64xf32>
    %132 = tpu.matmul %129, %131, %cst_45 {dimension_numbers = #tpu.dot_dimension_numbers<[1], [0], [0], [1], [0, 0, 1, 1], [], []>} : vector<16x32xbf16>, vector<32x64xbf16>, vector<16x64xf32> -> vector<16x64xf32>
    %c0_46 = arith.constant 0 : index
    %c0_47 = arith.constant 0 : index
    %133 = vector.load %arg9[%c0_46, %c0_47] : memref<2x64xf32, #tpu.memory_space<vmem>>, vector<1x64xf32>
    %134 = vector.shape_cast %133 : vector<1x64xf32> to vector<64xf32>
    %135 = vector.shape_cast %134 : vector<64xf32> to vector<1x64xf32>
    %136 = vector.broadcast %135 : vector<1x64xf32> to vector<16x64xf32>
    %137 = arith.addf %132, %136 : vector<16x64xf32>
    %138 = arith.mulf %137, %137 : vector<16x64xf32>
    %139 = arith.mulf %137, %138 : vector<16x64xf32>
    %cst_48 = arith.constant 4.471500e-02 : f32
    %140 = vector.broadcast %cst_48 : f32 to vector<16x64xf32>
    %141 = arith.mulf %140, %139 : vector<16x64xf32>
    %142 = arith.addf %137, %141 : vector<16x64xf32>
    %cst_49 = arith.constant 0.797884583 : f32
    %143 = vector.broadcast %cst_49 : f32 to vector<16x64xf32>
    %144 = arith.mulf %143, %142 : vector<16x64xf32>
    %145 = math.tanh %144 : vector<16x64xf32>
    %cst_50 = arith.constant 1.000000e+00 : f32
    %146 = vector.broadcast %cst_50 : f32 to vector<16x64xf32>
    %147 = arith.addf %146, %145 : vector<16x64xf32>
    %cst_51 = arith.constant 5.000000e-01 : f32
    %148 = vector.broadcast %cst_51 : f32 to vector<16x64xf32>
    %149 = arith.mulf %148, %147 : vector<16x64xf32>
    %150 = arith.mulf %137, %149 : vector<16x64xf32>
    %151 = arith.truncf %150 : vector<16x64xf32> to vector<16x64xbf16>
    %c0_52 = arith.constant 0 : index
    %c0_53 = arith.constant 0 : index
    %c0_54 = arith.constant 0 : index
    %152 = vector.load %arg10[%c0_52, %c0_53, %c0_54] : memref<2x64x32xbf16, #tpu.memory_space<vmem>>, vector<1x64x32xbf16>
    %153 = vector.shape_cast %152 : vector<1x64x32xbf16> to vector<64x32xbf16>
    %cst_55 = arith.constant dense<0.000000e+00> : vector<16x32xf32>
    %154 = tpu.matmul %151, %153, %cst_55 {dimension_numbers = #tpu.dot_dimension_numbers<[1], [0], [0], [1], [0, 0, 1, 1], [], []>} : vector<16x64xbf16>, vector<64x32xbf16>, vector<16x32xf32> -> vector<16x32xf32>
    %c0_56 = arith.constant 0 : index
    %c0_57 = arith.constant 0 : index
    %155 = vector.load %arg11[%c0_56, %c0_57] : memref<2x32xf32, #tpu.memory_space<vmem>>, vector<1x32xf32>
    %156 = vector.shape_cast %155 : vector<1x32xf32> to vector<32xf32>
    %157 = vector.shape_cast %156 : vector<32xf32> to vector<1x32xf32>
    %158 = vector.broadcast %157 : vector<1x32xf32> to vector<16x32xf32>
    %159 = arith.addf %154, %158 : vector<16x32xf32>
    %160 = arith.addf %128, %159 : vector<16x32xf32>
    %c0_58 = arith.constant 0 : index
    %c0_59 = arith.constant 0 : index
    %161 = vector.load %arg12[%c0_58, %c0_59] : memref<2x32xf32, #tpu.memory_space<vmem>>, vector<1x32xf32>
    %162 = vector.shape_cast %161 : vector<1x32xf32> to vector<32xf32>
    %c0_60 = arith.constant 0 : index
    %c0_61 = arith.constant 0 : index
    %163 = vector.load %arg13[%c0_60, %c0_61] : memref<2x32xf32, #tpu.memory_space<vmem>>, vector<1x32xf32>
    %164 = vector.shape_cast %163 : vector<1x32xf32> to vector<32xf32>
    %cst_62 = arith.constant dense<0.000000e+00> : vector<16xf32>
    %165 = vector.multi_reduction <add>, %160, %cst_62 [1] : vector<16x32xf32> to vector<16xf32>
    %166 = vector.shape_cast %165 : vector<16xf32> to vector<16x1xf32>
    %cst_63 = arith.constant 3.200000e+01 : f32
    %167 = vector.broadcast %cst_63 : f32 to vector<16x1xf32>
    %168 = arith.divf %166, %167 : vector<16x1xf32>
    %169 = vector.broadcast %168 : vector<16x1xf32> to vector<16x32xf32>
    %170 = arith.subf %160, %169 : vector<16x32xf32>
    %171 = arith.mulf %170, %170 : vector<16x32xf32>
    %cst_64 = arith.constant dense<0.000000e+00> : vector<16xf32>
    %172 = vector.multi_reduction <add>, %171, %cst_64 [1] : vector<16x32xf32> to vector<16xf32>
    %173 = vector.shape_cast %172 : vector<16xf32> to vector<16x1xf32>
    %cst_65 = arith.constant 3.200000e+01 : f32
    %174 = vector.broadcast %cst_65 : f32 to vector<16x1xf32>
    %175 = arith.divf %173, %174 : vector<16x1xf32>
    %176 = vector.broadcast %168 : vector<16x1xf32> to vector<16x32xf32>
    %177 = arith.subf %160, %176 : vector<16x32xf32>
    %cst_66 = arith.constant 9.99999996E-13 : f32
    %178 = vector.broadcast %cst_66 : f32 to vector<16x1xf32>
    %179 = arith.addf %175, %178 : vector<16x1xf32>
    %180 = math.rsqrt %179 : vector<16x1xf32>
    %181 = vector.broadcast %180 : vector<16x1xf32> to vector<16x32xf32>
    %182 = arith.mulf %177, %181 : vector<16x32xf32>
    %183 = vector.shape_cast %162 : vector<32xf32> to vector<1x32xf32>
    %184 = vector.broadcast %183 : vector<1x32xf32> to vector<16x32xf32>
    %185 = arith.mulf %182, %184 : vector<16x32xf32>
    %186 = vector.shape_cast %164 : vector<32xf32> to vector<1x32xf32>
    %187 = vector.broadcast %186 : vector<1x32xf32> to vector<16x32xf32>
    %188 = arith.addf %185, %187 : vector<16x32xf32>
    %189 = arith.truncf %188 : vector<16x32xf32> to vector<16x32xbf16>
    %c1_67 = arith.constant 1 : index
    %c0_68 = arith.constant 0 : index
    %c0_69 = arith.constant 0 : index
    %190 = vector.load %arg2[%c1_67, %c0_68, %c0_69] : memref<2x32x768xbf16, #tpu.memory_space<vmem>>, vector<1x32x768xbf16>
    %191 = vector.shape_cast %190 : vector<1x32x768xbf16> to vector<32x768xbf16>
    %cst_70 = arith.constant dense<0.000000e+00> : vector<16x768xf32>
    %192 = tpu.matmul %189, %191, %cst_70 {dimension_numbers = #tpu.dot_dimension_numbers<[1], [0], [0], [1], [0, 0, 1, 1], [], []>} : vector<16x32xbf16>, vector<32x768xbf16>, vector<16x768xf32> -> vector<16x768xf32>
    %c1_71 = arith.constant 1 : index
    %c0_72 = arith.constant 0 : index
    %193 = vector.load %arg3[%c1_71, %c0_72] : memref<2x768xf32, #tpu.memory_space<vmem>>, vector<1x768xf32>
    %194 = vector.shape_cast %193 : vector<1x768xf32> to vector<768xf32>
    %195 = vector.shape_cast %194 : vector<768xf32> to vector<1x768xf32>
    %196 = vector.broadcast %195 : vector<1x768xf32> to vector<16x768xf32>
    %197 = arith.addf %192, %196 : vector<16x768xf32>
    %198 = arith.truncf %197 : vector<16x768xf32> to vector<16x768xbf16>
    %c1_73 = arith.constant 1 : index
    %c0_74 = arith.constant 0 : index
    %c0_75 = arith.constant 0 : index
    %199 = vector.load %arg4[%c1_73, %c0_74, %c0_75] : memref<2x256x32xbf16, #tpu.memory_space<vmem>>, vector<1x256x32xbf16>
    %200 = vector.shape_cast %199 : vector<1x256x32xbf16> to vector<256x32xbf16>
    %cst_76 = arith.constant 0.000000e+00 : f32
    %201 = vector.broadcast %cst_76 : f32 to vector<16x32xf32>
    %202 = vector.extract_strided_slice %198 {offsets = [0, 0], sizes = [16, 128], strides = [1, 1]} : vector<16x768xbf16> to vector<16x128xbf16>
    %203 = vector.extract_strided_slice %198 {offsets = [0, 256], sizes = [16, 128], strides = [1, 1]} : vector<16x768xbf16> to vector<16x128xbf16>
    %204 = vector.extract_strided_slice %198 {offsets = [0, 512], sizes = [16, 128], strides = [1, 1]} : vector<16x768xbf16> to vector<16x128xbf16>
    %cst_77 = arith.constant dense<0.000000e+00> : vector<16x16xf32>
    %205 = tpu.matmul %202, %203, %cst_77 {dimension_numbers = #tpu.dot_dimension_numbers<[1], [1], [0], [0], [0, 0, 1, 0], [], []>} : vector<16x128xbf16>, vector<16x128xbf16>, vector<16x16xf32> -> vector<16x16xf32>
    %206 = arith.addf %205, %40 : vector<16x16xf32>
    %cst_78 = arith.constant dense<0xFF800000> : vector<16xf32>
    %207 = vector.multi_reduction <maximumf>, %206, %cst_78 [1] : vector<16x16xf32> to vector<16xf32>
    %208 = vector.shape_cast %207 : vector<16xf32> to vector<16x1xf32>
    %209 = vector.broadcast %208 : vector<16x1xf32> to vector<16x16xf32>
    %210 = arith.subf %206, %209 : vector<16x16xf32>
    %211 = math.exp %210 : vector<16x16xf32>
    %cst_79 = arith.constant dense<0.000000e+00> : vector<16xf32>
    %212 = vector.multi_reduction <add>, %211, %cst_79 [1] : vector<16x16xf32> to vector<16xf32>
    %213 = vector.shape_cast %212 : vector<16xf32> to vector<16x1xf32>
    %214 = tpu.reciprocal %213 {approx = true} : vector<16x1xf32> -> vector<16x1xf32>
    %215 = vector.broadcast %214 : vector<16x1xf32> to vector<16x16xf32>
    %216 = arith.mulf %211, %215 : vector<16x16xf32>
    %217 = arith.truncf %216 : vector<16x16xf32> to vector<16x16xbf16>
    %cst_80 = arith.constant dense<0.000000e+00> : vector<16x128xf32>
    %218 = tpu.matmul %217, %204, %cst_80 {dimension_numbers = #tpu.dot_dimension_numbers<[1], [0], [0], [1], [0, 0, 1, 1], [], []>} : vector<16x16xbf16>, vector<16x128xbf16>, vector<16x128xf32> -> vector<16x128xf32>
    %219 = arith.truncf %218 : vector<16x128xf32> to vector<16x128xbf16>
    %220 = vector.extract_strided_slice %200 {offsets = [0, 0], sizes = [128, 32], strides = [1, 1]} : vector<256x32xbf16> to vector<128x32xbf16>
    %cst_81 = arith.constant dense<0.000000e+00> : vector<16x32xf32>
    %221 = tpu.matmul %219, %220, %cst_81 {dimension_numbers = #tpu.dot_dimension_numbers<[1], [0], [0], [1], [0, 0, 1, 1], [], []>} : vector<16x128xbf16>, vector<128x32xbf16>, vector<16x32xf32> -> vector<16x32xf32>
    %222 = arith.addf %201, %221 : vector<16x32xf32>
    %223 = vector.extract_strided_slice %198 {offsets = [0, 128], sizes = [16, 128], strides = [1, 1]} : vector<16x768xbf16> to vector<16x128xbf16>
    %224 = vector.extract_strided_slice %198 {offsets = [0, 384], sizes = [16, 128], strides = [1, 1]} : vector<16x768xbf16> to vector<16x128xbf16>
    %225 = vector.extract_strided_slice %198 {offsets = [0, 640], sizes = [16, 128], strides = [1, 1]} : vector<16x768xbf16> to vector<16x128xbf16>
    %cst_82 = arith.constant dense<0.000000e+00> : vector<16x16xf32>
    %226 = tpu.matmul %223, %224, %cst_82 {dimension_numbers = #tpu.dot_dimension_numbers<[1], [1], [0], [0], [0, 0, 1, 0], [], []>} : vector<16x128xbf16>, vector<16x128xbf16>, vector<16x16xf32> -> vector<16x16xf32>
    %227 = arith.addf %226, %40 : vector<16x16xf32>
    %cst_83 = arith.constant dense<0xFF800000> : vector<16xf32>
    %228 = vector.multi_reduction <maximumf>, %227, %cst_83 [1] : vector<16x16xf32> to vector<16xf32>
    %229 = vector.shape_cast %228 : vector<16xf32> to vector<16x1xf32>
    %230 = vector.broadcast %229 : vector<16x1xf32> to vector<16x16xf32>
    %231 = arith.subf %227, %230 : vector<16x16xf32>
    %232 = math.exp %231 : vector<16x16xf32>
    %cst_84 = arith.constant dense<0.000000e+00> : vector<16xf32>
    %233 = vector.multi_reduction <add>, %232, %cst_84 [1] : vector<16x16xf32> to vector<16xf32>
    %234 = vector.shape_cast %233 : vector<16xf32> to vector<16x1xf32>
    %235 = tpu.reciprocal %234 {approx = true} : vector<16x1xf32> -> vector<16x1xf32>
    %236 = vector.broadcast %235 : vector<16x1xf32> to vector<16x16xf32>
    %237 = arith.mulf %232, %236 : vector<16x16xf32>
    %238 = arith.truncf %237 : vector<16x16xf32> to vector<16x16xbf16>
    %cst_85 = arith.constant dense<0.000000e+00> : vector<16x128xf32>
    %239 = tpu.matmul %238, %225, %cst_85 {dimension_numbers = #tpu.dot_dimension_numbers<[1], [0], [0], [1], [0, 0, 1, 1], [], []>} : vector<16x16xbf16>, vector<16x128xbf16>, vector<16x128xf32> -> vector<16x128xf32>
    %240 = arith.truncf %239 : vector<16x128xf32> to vector<16x128xbf16>
    %241 = vector.extract_strided_slice %200 {offsets = [128, 0], sizes = [128, 32], strides = [1, 1]} : vector<256x32xbf16> to vector<128x32xbf16>
    %cst_86 = arith.constant dense<0.000000e+00> : vector<16x32xf32>
    %242 = tpu.matmul %240, %241, %cst_86 {dimension_numbers = #tpu.dot_dimension_numbers<[1], [0], [0], [1], [0, 0, 1, 1], [], []>} : vector<16x128xbf16>, vector<128x32xbf16>, vector<16x32xf32> -> vector<16x32xf32>
    %243 = arith.addf %222, %242 : vector<16x32xf32>
    %c1_87 = arith.constant 1 : index
    %c0_88 = arith.constant 0 : index
    %244 = vector.load %arg5[%c1_87, %c0_88] : memref<2x32xf32, #tpu.memory_space<vmem>>, vector<1x32xf32>
    %245 = vector.shape_cast %244 : vector<1x32xf32> to vector<32xf32>
    %246 = vector.shape_cast %245 : vector<32xf32> to vector<1x32xf32>
    %247 = vector.broadcast %246 : vector<1x32xf32> to vector<16x32xf32>
    %248 = arith.addf %243, %247 : vector<16x32xf32>
    %249 = arith.addf %188, %248 : vector<16x32xf32>
    %c1_89 = arith.constant 1 : index
    %c0_90 = arith.constant 0 : index
    %250 = vector.load %arg6[%c1_89, %c0_90] : memref<2x32xf32, #tpu.memory_space<vmem>>, vector<1x32xf32>
    %251 = vector.shape_cast %250 : vector<1x32xf32> to vector<32xf32>
    %c1_91 = arith.constant 1 : index
    %c0_92 = arith.constant 0 : index
    %252 = vector.load %arg7[%c1_91, %c0_92] : memref<2x32xf32, #tpu.memory_space<vmem>>, vector<1x32xf32>
    %253 = vector.shape_cast %252 : vector<1x32xf32> to vector<32xf32>
    %cst_93 = arith.constant dense<0.000000e+00> : vector<16xf32>
    %254 = vector.multi_reduction <add>, %249, %cst_93 [1] : vector<16x32xf32> to vector<16xf32>
    %255 = vector.shape_cast %254 : vector<16xf32> to vector<16x1xf32>
    %cst_94 = arith.constant 3.200000e+01 : f32
    %256 = vector.broadcast %cst_94 : f32 to vector<16x1xf32>
    %257 = arith.divf %255, %256 : vector<16x1xf32>
    %258 = vector.broadcast %257 : vector<16x1xf32> to vector<16x32xf32>
    %259 = arith.subf %249, %258 : vector<16x32xf32>
    %260 = arith.mulf %259, %259 : vector<16x32xf32>
    %cst_95 = arith.constant dense<0.000000e+00> : vector<16xf32>
    %261 = vector.multi_reduction <add>, %260, %cst_95 [1] : vector<16x32xf32> to vector<16xf32>
    %262 = vector.shape_cast %261 : vector<16xf32> to vector<16x1xf32>
    %cst_96 = arith.constant 3.200000e+01 : f32
    %263 = vector.broadcast %cst_96 : f32 to vector<16x1xf32>
    %264 = arith.divf %262, %263 : vector<16x1xf32>
    %265 = vector.broadcast %257 : vector<16x1xf32> to vector<16x32xf32>
    %266 = arith.subf %249, %265 : vector<16x32xf32>
    %cst_97 = arith.constant 9.99999996E-13 : f32
    %267 = vector.broadcast %cst_97 : f32 to vector<16x1xf32>
    %268 = arith.addf %264, %267 : vector<16x1xf32>
    %269 = math.rsqrt %268 : vector<16x1xf32>
    %270 = vector.broadcast %269 : vector<16x1xf32> to vector<16x32xf32>
    %271 = arith.mulf %266, %270 : vector<16x32xf32>
    %272 = vector.shape_cast %251 : vector<32xf32> to vector<1x32xf32>
    %273 = vector.broadcast %272 : vector<1x32xf32> to vector<16x32xf32>
    %274 = arith.mulf %271, %273 : vector<16x32xf32>
    %275 = vector.shape_cast %253 : vector<32xf32> to vector<1x32xf32>
    %276 = vector.broadcast %275 : vector<1x32xf32> to vector<16x32xf32>
    %277 = arith.addf %274, %276 : vector<16x32xf32>
    %278 = arith.truncf %277 : vector<16x32xf32> to vector<16x32xbf16>
    %c1_98 = arith.constant 1 : index
    %c0_99 = arith.constant 0 : index
    %c0_100 = arith.constant 0 : index
    %279 = vector.load %arg8[%c1_98, %c0_99, %c0_100] : memref<2x32x64xbf16, #tpu.memory_space<vmem>>, vector<1x32x64xbf16>
    %280 = vector.shape_cast %279 : vector<1x32x64xbf16> to vector<32x64xbf16>
    %cst_101 = arith.constant dense<0.000000e+00> : vector<16x64xf32>
    %281 = tpu.matmul %278, %280, %cst_101 {dimension_numbers = #tpu.dot_dimension_numbers<[1], [0], [0], [1], [0, 0, 1, 1], [], []>} : vector<16x32xbf16>, vector<32x64xbf16>, vector<16x64xf32> -> vector<16x64xf32>
    %c1_102 = arith.constant 1 : index
    %c0_103 = arith.constant 0 : index
    %282 = vector.load %arg9[%c1_102, %c0_103] : memref<2x64xf32, #tpu.memory_space<vmem>>, vector<1x64xf32>
    %283 = vector.shape_cast %282 : vector<1x64xf32> to vector<64xf32>
    %284 = vector.shape_cast %283 : vector<64xf32> to vector<1x64xf32>
    %285 = vector.broadcast %284 : vector<1x64xf32> to vector<16x64xf32>
    %286 = arith.addf %281, %285 : vector<16x64xf32>
    %287 = arith.mulf %286, %286 : vector<16x64xf32>
    %288 = arith.mulf %286, %287 : vector<16x64xf32>
    %cst_104 = arith.constant 4.471500e-02 : f32
    %289 = vector.broadcast %cst_104 : f32 to vector<16x64xf32>
    %290 = arith.mulf %289, %288 : vector<16x64xf32>
    %291 = arith.addf %286, %290 : vector<16x64xf32>
    %cst_105 = arith.constant 0.797884583 : f32
    %292 = vector.broadcast %cst_105 : f32 to vector<16x64xf32>
    %293 = arith.mulf %292, %291 : vector<16x64xf32>
    %294 = math.tanh %293 : vector<16x64xf32>
    %cst_106 = arith.constant 1.000000e+00 : f32
    %295 = vector.broadcast %cst_106 : f32 to vector<16x64xf32>
    %296 = arith.addf %295, %294 : vector<16x64xf32>
    %cst_107 = arith.constant 5.000000e-01 : f32
    %297 = vector.broadcast %cst_107 : f32 to vector<16x64xf32>
    %298 = arith.mulf %297, %296 : vector<16x64xf32>
    %299 = arith.mulf %286, %298 : vector<16x64xf32>
    %300 = arith.truncf %299 : vector<16x64xf32> to vector<16x64xbf16>
    %c1_108 = arith.constant 1 : index
    %c0_109 = arith.constant 0 : index
    %c0_110 = arith.constant 0 : index
    %301 = vector.load %arg10[%c1_108, %c0_109, %c0_110] : memref<2x64x32xbf16, #tpu.memory_space<vmem>>, vector<1x64x32xbf16>
    %302 = vector.shape_cast %301 : vector<1x64x32xbf16> to vector<64x32xbf16>
    %cst_111 = arith.constant dense<0.000000e+00> : vector<16x32xf32>
    %303 = tpu.matmul %300, %302, %cst_111 {dimension_numbers = #tpu.dot_dimension_numbers<[1], [0], [0], [1], [0, 0, 1, 1], [], []>} : vector<16x64xbf16>, vector<64x32xbf16>, vector<16x32xf32> -> vector<16x32xf32>
    %c1_112 = arith.constant 1 : index
    %c0_113 = arith.constant 0 : index
    %304 = vector.load %arg11[%c1_112, %c0_113] : memref<2x32xf32, #tpu.memory_space<vmem>>, vector<1x32xf32>
    %305 = vector.shape_cast %304 : vector<1x32xf32> to vector<32xf32>
    %306 = vector.shape_cast %305 : vector<32xf32> to vector<1x32xf32>
    %307 = vector.broadcast %306 : vector<1x32xf32> to vector<16x32xf32>
    %308 = arith.addf %303, %307 : vector<16x32xf32>
    %309 = arith.addf %277, %308 : vector<16x32xf32>
    %c1_114 = arith.constant 1 : index
    %c0_115 = arith.constant 0 : index
    %310 = vector.load %arg12[%c1_114, %c0_115] : memref<2x32xf32, #tpu.memory_space<vmem>>, vector<1x32xf32>
    %311 = vector.shape_cast %310 : vector<1x32xf32> to vector<32xf32>
    %c1_116 = arith.constant 1 : index
    %c0_117 = arith.constant 0 : index
    %312 = vector.load %arg13[%c1_116, %c0_117] : memref<2x32xf32, #tpu.memory_space<vmem>>, vector<1x32xf32>
    %313 = vector.shape_cast %312 : vector<1x32xf32> to vector<32xf32>
    %cst_118 = arith.constant dense<0.000000e+00> : vector<16xf32>
    %314 = vector.multi_reduction <add>, %309, %cst_118 [1] : vector<16x32xf32> to vector<16xf32>
    %315 = vector.shape_cast %314 : vector<16xf32> to vector<16x1xf32>
    %cst_119 = arith.constant 3.200000e+01 : f32
    %316 = vector.broadcast %cst_119 : f32 to vector<16x1xf32>
    %317 = arith.divf %315, %316 : vector<16x1xf32>
    %318 = vector.broadcast %317 : vector<16x1xf32> to vector<16x32xf32>
    %319 = arith.subf %309, %318 : vector<16x32xf32>
    %320 = arith.mulf %319, %319 : vector<16x32xf32>
    %cst_120 = arith.constant dense<0.000000e+00> : vector<16xf32>
    %321 = vector.multi_reduction <add>, %320, %cst_120 [1] : vector<16x32xf32> to vector<16xf32>
    %322 = vector.shape_cast %321 : vector<16xf32> to vector<16x1xf32>
    %cst_121 = arith.constant 3.200000e+01 : f32
    %323 = vector.broadcast %cst_121 : f32 to vector<16x1xf32>
    %324 = arith.divf %322, %323 : vector<16x1xf32>
    %325 = vector.broadcast %317 : vector<16x1xf32> to vector<16x32xf32>
    %326 = arith.subf %309, %325 : vector<16x32xf32>
    %cst_122 = arith.constant 9.99999996E-13 : f32
    %327 = vector.broadcast %cst_122 : f32 to vector<16x1xf32>
    %328 = arith.addf %324, %327 : vector<16x1xf32>
    %329 = math.rsqrt %328 : vector<16x1xf32>
    %330 = vector.broadcast %329 : vector<16x1xf32> to vector<16x32xf32>
    %331 = arith.mulf %326, %330 : vector<16x32xf32>
    %332 = vector.shape_cast %311 : vector<32xf32> to vector<1x32xf32>
    %333 = vector.broadcast %332 : vector<1x32xf32> to vector<16x32xf32>
    %334 = arith.mulf %331, %333 : vector<16x32xf32>
    %335 = vector.shape_cast %313 : vector<32xf32> to vector<1x32xf32>
    %336 = vector.broadcast %335 : vector<1x32xf32> to vector<16x32xf32>
    %337 = arith.addf %334, %336 : vector<16x32xf32>
    %338 = arith.truncf %337 : vector<16x32xf32> to vector<16x32xbf16>
    %c0_123 = arith.constant 0 : index
    %c0_124 = arith.constant 0 : index
    %339 = vector.load %arg14[%c0_123, %c0_124] : memref<32x32xbf16, #tpu.memory_space<vmem>>, vector<32x32xbf16>
    %cst_125 = arith.constant dense<0.000000e+00> : vector<16x32xf32>
    %340 = tpu.matmul %338, %339, %cst_125 {dimension_numbers = #tpu.dot_dimension_numbers<[1], [0], [0], [1], [0, 0, 1, 1], [], []>} : vector<16x32xbf16>, vector<32x32xbf16>, vector<16x32xf32> -> vector<16x32xf32>
    %c0_126 = arith.constant 0 : index
    %c0_127 = arith.constant 0 : index
    %341 = vector.load %arg15[%c0_126, %c0_127] : memref<1x32xf32, #tpu.memory_space<vmem>>, vector<1x32xf32>
    %342 = vector.broadcast %341 : vector<1x32xf32> to vector<16x32xf32>
    %343 = arith.addf %340, %342 : vector<16x32xf32>
    %344 = math.tanh %343 : vector<16x32xf32>
    %345 = arith.truncf %344 : vector<16x32xf32> to vector<16x32xbf16>
    %c0_128 = arith.constant 0 : index
    %c0_129 = arith.constant 0 : index
    %346 = vector.load %arg16[%c0_128, %c0_129] : memref<32x128xbf16, #tpu.memory_space<vmem>>, vector<32x128xbf16>
    %cst_130 = arith.constant dense<0.000000e+00> : vector<16x128xf32>
    %347 = tpu.matmul %345, %346, %cst_130 {dimension_numbers = #tpu.dot_dimension_numbers<[1], [0], [0], [1], [0, 0, 1, 1], [], []>} : vector<16x32xbf16>, vector<32x128xbf16>, vector<16x128xf32> -> vector<16x128xf32>
    %c0_131 = arith.constant 0 : index
    %c0_132 = arith.constant 0 : index
    %348 = vector.load %arg17[%c0_131, %c0_132] : memref<1x128xf32, #tpu.memory_space<vmem>>, vector<1x128xf32>
    %349 = vector.broadcast %348 : vector<1x128xf32> to vector<16x128xf32>
    %350 = arith.addf %347, %349 : vector<16x128xf32>
    %c0_133 = arith.constant 0 : index
    %c0_134 = arith.constant 0 : index
    %351 = vector.load %arg18[%c0_133, %c0_134] : memref<16x128xf32, #tpu.memory_space<vmem>>, vector<16x128xf32>
    tpu.vector_store %arg18[%c0_133, %c0_134], %350 {strides = array<i32>} : memref<16x128xf32, #tpu.memory_space<vmem>>, vector<16x128xf32>,
    return
  }
}

</mosaic_0001>

<llo_original>
// kernel: tpu_custom_call.1
$region0: #{tpu_custom_call.1}
  #allocation0 [shape = 'u32[]', space=smem, size = 0x4, offset = 0x4, fixed_abs, tag = 'smem constant byte address 0x4 - core index']
  #allocation1 [shape = 'u32[144,128]{1,0:T(1,128)}', space=vmem, size = 0x12000, scoped, tag = 'internal scratch']
  %s0 = inlined_call_operand.vmem [shape: s32[2], index: 0, kind: input, shape index: {}]
  %s1 = inlined_call_operand.vmem [shape: f32[16,32], index: 1, kind: input, shape index: {}]
  %s2 = inlined_call_operand.vmem [shape: bf16[2,32,768], index: 2, kind: input, shape index: {}]
  %s3 = inlined_call_operand.vmem [shape: f32[2,768], index: 3, kind: input, shape index: {}]
  %s4 = inlined_call_operand.vmem [shape: bf16[2,256,32], index: 4, kind: input, shape index: {}]
  %s5 = inlined_call_operand.vmem [shape: f32[2,32], index: 5, kind: input, shape index: {}]
  %s6 = inlined_call_operand.vmem [shape: f32[2,32], index: 6, kind: input, shape index: {}]
  %s7 = inlined_call_operand.vmem [shape: f32[2,32], index: 7, kind: input, shape index: {}]
  %s8 = inlined_call_operand.vmem [shape: bf16[2,32,64], index: 8, kind: input, shape index: {}]
  %s9 = inlined_call_operand.vmem [shape: f32[2,64], index: 9, kind: input, shape index: {}]
  %s10 = inlined_call_operand.vmem [shape: bf16[2,64,32], index: 10, kind: input, shape index: {}]
  %s11 = inlined_call_operand.vmem [shape: f32[2,32], index: 11, kind: input, shape index: {}]
  %s12 = inlined_call_operand.vmem [shape: f32[2,32], index: 12, kind: input, shape index: {}]
  %s13 = inlined_call_operand.vmem [shape: f32[2,32], index: 13, kind: input, shape index: {}]
  %s14 = inlined_call_operand.vmem [shape: bf16[32,32], index: 14, kind: input, shape index: {}]
  %s15 = inlined_call_operand.vmem [shape: f32[1,32], index: 15, kind: input, shape index: {}]
  %s16 = inlined_call_operand.vmem [shape: bf16[32,128], index: 16, kind: input, shape index: {}]
  %s17 = inlined_call_operand.vmem [shape: f32[1,128], index: 17, kind: input, shape index: {}]
  %s18 = inlined_call_operand.hbm [shape: f32[16,128], index: 18, kind: output, shape index: {}]
  %s19 = sld [smem:[#allocation0]]
  $region86: #{tpu_custom_call.1} parent=0
    _
  %s21 = ssub.s32 1, %s19
  %s22 = scalar_select 0, %s21, %s19
  $region1: #{tpu_custom_call.1} parent=0
    #allocation2 [shape = 'u8[512]{0}', space=smem, size = 0x200, scoped, tag = 'input window, operand 0, single buffered']
    #allocation3 [shape = 's32[1]{0}', space=sflag, size = 0x4, scoped, tag = 'scoped memory for tpu_custom_call.1']
    #allocation4 [shape = 's32[1]{0}', space=sflag, size = 0x4, scoped, tag = 'scoped memory for tpu_custom_call.1']
    #allocation5 [shape = 'u8[8192]{0}', space=vmem, size = 0x2000, scoped, tag = 'output window, operand 0, single buffered']
    %23 = vsyncpa [#allocation4], 0
    %24 = vsyncpa [#allocation3], 0
    // Predicated region
    $region2: #{tpu_custom_call.1} parent=1 // pred_check
      _
    $region3: #{tpu_custom_call.1} parent=1 // pred_check_branch
      %26 = sbr.rel (0) target = $region5
    $region4: #{tpu_custom_call.1} parent=1 // pred_region
      %s28 = ssub.s32 16, 16
      %29 = vsyncadd [#allocation4], %s28
      %s31 = sshll.u32 %s0, 4
      %s32 = int_to_ptr.vmem [resolvable:$true] %s31
      %34 = dma.vmem_to_smem %s32, 16, [#allocation2], [#allocation4]
    $region5: #{tpu_custom_call.1} parent=1 // pred_fallthru
      _
    // Predicated region
    $region6: #{tpu_custom_call.1} parent=1 // pred_check
      _
    $region7: #{tpu_custom_call.1} parent=1 // pred_check_branch
      %36 = sbr.rel (0) target = $region9
    $region8: #{tpu_custom_call.1} parent=1 // pred_region
      _
    $region9: #{tpu_custom_call.1} parent=1 // pred_fallthru
      _
    // Predicated region
    $region10: #{tpu_custom_call.1} parent=1 // pred_check
      _
    $region11: #{tpu_custom_call.1} parent=1 // pred_check_branch
      %38 = sbr.rel (0) target = $region13
    $region12: #{tpu_custom_call.1} parent=1 // pred_region
      _
    $region13: #{tpu_custom_call.1} parent=1 // pred_fallthru
      _
    // Predicated region
    $region14: #{tpu_custom_call.1} parent=1 // pred_check
      _
    $region15: #{tpu_custom_call.1} parent=1 // pred_check_branch
      %40 = sbr.rel (0) target = $region17
    $region16: #{tpu_custom_call.1} parent=1 // pred_region
      _
    $region17: #{tpu_custom_call.1} parent=1 // pred_fallthru
      _
    // Predicated region
    $region18: #{tpu_custom_call.1} parent=1 // pred_check
      _
    $region19: #{tpu_custom_call.1} parent=1 // pred_check_branch
      %42 = sbr.rel (0) target = $region21
    $region20: #{tpu_custom_call.1} parent=1 // pred_region
      _
    $region21: #{tpu_custom_call.1} parent=1 // pred_fallthru
      _
    // Predicated region
    $region22: #{tpu_custom_call.1} parent=1 // pred_check
      _
    $region23: #{tpu_custom_call.1} parent=1 // pred_check_branch
      %44 = sbr.rel (0) target = $region25
    $region24: #{tpu_custom_call.1} parent=1 // pred_region
      _
    $region25: #{tpu_custom_call.1} parent=1 // pred_fallthru
      _
    // Predicated region
    $region26: #{tpu_custom_call.1} parent=1 // pred_check
      _
    $region27: #{tpu_custom_call.1} parent=1 // pred_check_branch
      %46 = sbr.rel (0) target = $region29
    $region28: #{tpu_custom_call.1} parent=1 // pred_region
      _
    $region29: #{tpu_custom_call.1} parent=1 // pred_fallthru
      _
    // Predicated region
    $region30: #{tpu_custom_call.1} parent=1 // pred_check
      _
    $region31: #{tpu_custom_call.1} parent=1 // pred_check_branch
      %48 = sbr.rel (0) target = $region33
    $region32: #{tpu_custom_call.1} parent=1 // pred_region
      _
    $region33: #{tpu_custom_call.1} parent=1 // pred_fallthru
      _
    // Predicated region
    $region34: #{tpu_custom_call.1} parent=1 // pred_check
      _
    $region35: #{tpu_custom_call.1} parent=1 // pred_check_branch
      %50 = sbr.rel (0) target = $region37
    $region36: #{tpu_custom_call.1} parent=1 // pred_region
      _
    $region37: #{tpu_custom_call.1} parent=1 // pred_fallthru
      _
    // Predicated region
    $region38: #{tpu_custom_call.1} parent=1 // pred_check
      _
    $region39: #{tpu_custom_call.1} parent=1 // pred_check_branch
      %52 = sbr.rel (0) target = $region41
    $region40: #{tpu_custom_call.1} parent=1 // pred_region
      _
    $region41: #{tpu_custom_call.1} parent=1 // pred_fallthru
      _
    // Predicated region
    $region42: #{tpu_custom_call.1} parent=1 // pred_check
      _
    $region43: #{tpu_custom_call.1} parent=1 // pred_check_branch
      %54 = sbr.rel (0) target = $region45
    $region44: #{tpu_custom_call.1} parent=1 // pred_region
      _
    $region45: #{tpu_custom_call.1} parent=1 // pred_fallthru
      _
    // Predicated region
    $region46: #{tpu_custom_call.1} parent=1 // pred_check
      _
    $region47: #{tpu_custom_call.1} parent=1 // pred_check_branch
      %56 = sbr.rel (0) target = $region49
    $region48: #{tpu_custom_call.1} parent=1 // pred_region
      _
    $region49: #{tpu_custom_call.1} parent=1 // pred_fallthru
      _
    // Predicated region
    $region50: #{tpu_custom_call.1} parent=1 // pred_check
      _
    $region51: #{tpu_custom_call.1} parent=1 // pred_check_branch
      %58 = sbr.rel (0) target = $region53
    $region52: #{tpu_custom_call.1} parent=1 // pred_region
      _
    $region53: #{tpu_custom_call.1} parent=1 // pred_fallthru
      _
    // Predicated region
    $region54: #{tpu_custom_call.1} parent=1 // pred_check
      _
    $region55: #{tpu_custom_call.1} parent=1 // pred_check_branch
      %60 = sbr.rel (0) target = $region57
    $region56: #{tpu_custom_call.1} parent=1 // pred_region
      _
    $region57: #{tpu_custom_call.1} parent=1 // pred_fallthru
      _
    // Predicated region
    $region58: #{tpu_custom_call.1} parent=1 // pred_check
      _
    $region59: #{tpu_custom_call.1} parent=1 // pred_check_branch
      %62 = sbr.rel (0) target = $region61
    $region60: #{tpu_custom_call.1} parent=1 // pred_region
      _
    $region61: #{tpu_custom_call.1} parent=1 // pred_fallthru
      _
    // Predicated region
    $region62: #{tpu_custom_call.1} parent=1 // pred_check
      _
    $region63: #{tpu_custom_call.1} parent=1 // pred_check_branch
      %64 = sbr.rel (0) target = $region65
    $region64: #{tpu_custom_call.1} parent=1 // pred_region
      _
    $region65: #{tpu_custom_call.1} parent=1 // pred_fallthru
      _
    // Predicated region
    $region66: #{tpu_custom_call.1} parent=1 // pred_check
      _
    $region67: #{tpu_custom_call.1} parent=1 // pred_check_branch
      %66 = sbr.rel (0) target = $region69
    $region68: #{tpu_custom_call.1} parent=1 // pred_region
      _
    $region69: #{tpu_custom_call.1} parent=1 // pred_fallthru
      _
    // Predicated region
    $region70: #{tpu_custom_call.1} parent=1 // pred_check
      _
    $region71: #{tpu_custom_call.1} parent=1 // pred_check_branch
      %68 = sbr.rel (0) target = $region73
    $region72: #{tpu_custom_call.1} parent=1 // pred_region
      _
    $region73: #{tpu_custom_call.1} parent=1 // pred_fallthru
      _
    // Predicated region
    $region74: #{tpu_custom_call.1} parent=1 // pred_check
      _
    $region75: #{tpu_custom_call.1} parent=1 // pred_check_branch
      %70 = sbr.rel (0) target = $region77
    $region76: #{tpu_custom_call.1} parent=1 // pred_region
      %71 = dma.done [#allocation4], 16
    $region77: #{tpu_custom_call.1} parent=1 // pred_fallthru
      _
    %72 = sfence
    %v74 = vld [vmem:[%s1] sm:$0xff]
    %v75 = vld [vmem:[%s1 + $0x8] sm:$0xff]
    %v76 = vpack.c.bf16 %v75, %v74
    %v77 = vlaneseq
    %v78 = vshrl.u32 %v77, 7
    %v79 = vadd.s32 %v78, 8
    %v80 = vlaneseq
    %v81 = vand.u32 %v80, 127
    %vm82 = vcmp.ge.s32.totalorder %v78, 0
    %vm83 = vcmp.ge.s32.totalorder %v79, 0
    %vm84 = vcmp.lt.s32.totalorder %v78, 8
    %vm85 = vcmp.lt.s32.totalorder %v79, 8
    %vm86 = vmand %vm82, %vm84
    %vm87 = vmand %vm83, %vm85
    %vm88 = vcmp.ge.s32.totalorder %v81, 0
    %vm89 = vcmp.lt.s32.totalorder %v81, 8
    %vm90 = vmand %vm88, %vm89
    %s91 = sld [smem:[#allocation2]]
    %v92 = vstv %s91
    %vm93 = vcmp.lt.s32.totalorder %v81, %v92
    %vm94 = vmand %vm86, %vm90
    %vm95 = vmand %vm87, %vm90
    %vm96 = vmand %vm94, %vm93
    %vm97 = vmand %vm95, %vm93
    %v98 = vsel %vm96, 0.0, -1e+09
    %v99 = vsel %vm97, 0.0, -1e+09
    %vm100 = vcmp.ge.s32.totalorder %v78, 8
    %vm101 = vcmp.ge.s32.totalorder %v79, 8
    %vm102 = vcmp.lt.s32.totalorder %v78, 16
    %vm103 = vcmp.lt.s32.totalorder %v79, 16
    %vm104 = vmand %vm100, %vm102
    %vm105 = vmand %vm101, %vm103
    %vm106 = vcmp.ge.s32.totalorder %v81, 8
    %vm107 = vcmp.lt.s32.totalorder %v81, 16
    %vm108 = vmand %vm106, %vm107
    %s109 = sld [smem:[#allocation2 + $0x1]]
    %s110 = sadd.s32 %s109, 8
    %v111 = vstv %s110
    %vm112 = vcmp.lt.s32.totalorder %v81, %v111
    %vm113 = vmand %vm104, %vm108
    %vm114 = vmand %vm105, %vm108
    %vm115 = vmand %vm113, %vm112
    %vm116 = vmand %vm114, %vm112
    %v117 = vsel %vm115, 0.0, %v98
    %v118 = vsel %vm116, 0.0, %v99
    %v119 = vld [vmem:[%s2] sm:$0xff]
    %v120 = vld [vmem:[%s2 + $0x8] sm:$0xff]
    %v121 = vld [vmem:[%s2 + $0x10] sm:$0xff]
    %v122 = vld [vmem:[%s2 + $0x18] sm:$0xff]
    %v123 = vld [vmem:[%s2 + $0x20] sm:$0xff]
    %v124 = vld [vmem:[%s2 + $0x28] sm:$0xff]
    %v125 = vld [vmem:[%s2 + $0x30] sm:$0xff]
    %v126 = vld [vmem:[%s2 + $0x38] sm:$0xff]
    %v127 = vld [vmem:[%s2 + $0x40] sm:$0xff]
    %v128 = vld [vmem:[%s2 + $0x48] sm:$0xff]
    %v129 = vld [vmem:[%s2 + $0x50] sm:$0xff]
    %v130 = vld [vmem:[%s2 + $0x58] sm:$0xff]
    %v131 = vld [vmem:[%s3] ss:$2 sm:$0x3f]
    %v133 = vlaneseq
    %v134 = vshrl.u32 %v133, 7
    %v135 = vsub.s32 0, %v134
    %v136 = vrot.slane %v131, %v135
    %v137 = vlaneseq
    %v138 = vshrl.u32 %v137, 7
    %v139 = vsub.s32 1, %v138
    %v140 = vrot.slane %v131, %v139
    %v141 = vlaneseq
    %v142 = vshrl.u32 %v141, 7
    %v143 = vsub.s32 2, %v142
    %v144 = vrot.slane %v131, %v143
    %v145 = vlaneseq
    %v146 = vshrl.u32 %v145, 7
    %v147 = vsub.s32 3, %v146
    %v148 = vrot.slane %v131, %v147
    %v149 = vlaneseq
    %v150 = vshrl.u32 %v149, 7
    %v151 = vsub.s32 4, %v150
    %v152 = vrot.slane %v131, %v151
    %v153 = vlaneseq
    %v154 = vshrl.u32 %v153, 7
    %v155 = vsub.s32 5, %v154
    %v156 = vrot.slane %v131, %v155
    %v175 = vunpack.c.l.b16 %v119
    %v176 = vunpack.c.h.b16 %v119
    %v177 = vunpack.c.l.b16 %v120
    %v178 = vunpack.c.h.b16 %v120
    %v179 = vunpack.c.l.b16 %v121
    %v180 = vunpack.c.h.b16 %v121
    %v181 = vunpack.c.l.b16 %v122
    %v182 = vunpack.c.h.b16 %v122
    %v183 = vunpack.c.l.b16 %v123
    %v184 = vunpack.c.h.b16 %v123
    %v185 = vunpack.c.l.b16 %v124
    %v186 = vunpack.c.h.b16 %v124
    %v187 = vunpack.c.l.b16 %v125
    %v188 = vunpack.c.h.b16 %v125
    %v189 = vunpack.c.l.b16 %v126
    %v190 = vunpack.c.h.b16 %v126
    %v191 = vunpack.c.l.b16 %v127
    %v192 = vunpack.c.h.b16 %v127
    %v193 = vunpack.c.l.b16 %v128
    %v194 = vunpack.c.h.b16 %v128
    %v195 = vunpack.c.l.b16 %v129
    %v196 = vunpack.c.h.b16 %v129
    %v197 = vunpack.c.l.b16 %v130
    %v198 = vunpack.c.h.b16 %v130
    %v199 = vpack.c.b16 %v181, %v175
    %v200 = vpack.c.b16 %v182, %v176
    %v201 = vpack.c.b16 %v183, %v177
    %v202 = vpack.c.b16 %v184, %v178
    %v203 = vpack.c.b16 %v185, %v179
    %v204 = vpack.c.b16 %v186, %v180
    %v205 = vpack.c.b16 %v193, %v187
    %v206 = vpack.c.b16 %v194, %v188
    %v207 = vpack.c.b16 %v195, %v189
    %v208 = vpack.c.b16 %v196, %v190
    %v209 = vpack.c.b16 %v197, %v191
    %v210 = vpack.c.b16 %v198, %v192
    %vm223 = vcmask 261120
    %v225 = vsel %vm223, %v76, 0
    %227 = vmatprep.subr.bf16.mxu0 %v200
    %228 = vmatpush1.bf16.msra.mxu0 %v199
    %229 = vmatprep.subr.bf16.mxu0 %v206
    %230 = vmatpush1.bf16.msra.mxu0 %v205
    %231 = vmatprep.subr.bf16.mxu0 0
    %232 = vmatpush1.bf16.msra.mxu0 0
    %233 = vmatprep.subr.bf16.mxu0 0
    %234 = vmatpush1.bf16.msra.mxu0 0
    %235 = vmatprep.subr.bf16.mxu0 0
    %236 = vmatpush1.bf16.msra.mxu0 0
    %237 = vmatprep.subr.bf16.mxu0 0
    %238 = vmatpush1.bf16.msra.mxu0 0
    %239 = vmatprep.subr.bf16.mxu0 0
    %240 = vmatpush1.bf16.msra.mxu0 0
    %241 = vmatprep.subr.bf16.mxu0 0
    %242 = vmatpush1.bf16.msra.mxu0 0
    %243 = vmatprep.subr.bf16.mxu0 0
    %244 = vmatpush1.bf16.msra.mxu0 0
    %245 = vmatprep.subr.bf16.mxu0 0
    %246 = vmatpush1.bf16.msra.mxu0 0
    %247 = vmatprep.subr.bf16.mxu0 0
    %248 = vmatpush1.bf16.msra.mxu0 0
    %249 = vmatprep.subr.bf16.mxu0 0
    %250 = vmatpush1.bf16.msra.mxu0 0
    %251 = vmatprep.subr.bf16.mxu0 0
    %252 = vmatpush1.bf16.msra.mxu0 0
    %253 = vmatprep.subr.bf16.mxu0 0
    %254 = vmatpush1.bf16.msra.mxu0 0
    %255 = vmatprep.subr.bf16.mxu0 0
    %256 = vmatpush1.bf16.msra.mxu0 0
    %257 = vmatprep.subr.bf16.mxu0 0
    %258 = vmatpush1.bf16.msra.mxu0 0
    %259 = vmatprep.mubr.bf16.mxu0 0
    %260 = vmatmul.mubr.bf16.gmra.mrb[0].mxu0 %v225
    %v261 = vpop.f32.mrb[0].mxu0
    %v262 = vadd.f32 %v136, %v261
    %v263 = vpop.f32.mrb[0].mxu0
    %v264 = vadd.f32 %v140, %v263
    %v265 = vpop.f32.mrb[0].mxu0
    %v266 = vadd.f32 %v136, %v265
    %v267 = vpop.f32.mrb[0].mxu0
    %v268 = vadd.f32 %v140, %v267
    %269 = vdwg.mxu0
    %270 = vmatprep.subr.bf16.mxu0 %v202
    %271 = vmatpush1.bf16.msra.mxu0 %v201
    %272 = vmatprep.subr.bf16.mxu0 %v208
    %273 = vmatpush1.bf16.msra.mxu0 %v207
    %274 = vmatprep.subr.bf16.mxu0 0
    %275 = vmatpush1.bf16.msra.mxu0 0
    %276 = vmatprep.subr.bf16.mxu0 0
    %277 = vmatpush1.bf16.msra.mxu0 0
    %278 = vmatprep.subr.bf16.mxu0 0
    %279 = vmatpush1.bf16.msra.mxu0 0
    %280 = vmatprep.subr.bf16.mxu0 0
    %281 = vmatpush1.bf16.msra.mxu0 0
    %282 = vmatprep.subr.bf16.mxu0 0
    %283 = vmatpush1.bf16.msra.mxu0 0
    %284 = vmatprep.subr.bf16.mxu0 0
    %285 = vmatpush1.bf16.msra.mxu0 0
    %286 = vmatprep.subr.bf16.mxu0 0
    %287 = vmatpush1.bf16.msra.mxu0 0
    %288 = vmatprep.subr.bf16.mxu0 0
    %289 = vmatpush1.bf16.msra.mxu0 0
    %290 = vmatprep.subr.bf16.mxu0 0
    %291 = vmatpush1.bf16.msra.mxu0 0
    %292 = vmatprep.subr.bf16.mxu0 0
    %293 = vmatpush1.bf16.msra.mxu0 0
    %294 = vmatprep.subr.bf16.mxu0 0
    %295 = vmatpush1.bf16.msra.mxu0 0
    %296 = vmatprep.subr.bf16.mxu0 0
    %297 = vmatpush1.bf16.msra.mxu0 0
    %298 = vmatprep.subr.bf16.mxu0 0
    %299 = vmatpush1.bf16.msra.mxu0 0
    %300 = vmatprep.subr.bf16.mxu0 0
    %301 = vmatpush1.bf16.msra.mxu0 0
    %302 = vmatprep.mubr.bf16.mxu0 0
    %303 = vmatmul.mubr.bf16.gmra.mrb[0].mxu0 %v225
    %v304 = vpop.f32.mrb[0].mxu0
    %v305 = vadd.f32 %v144, %v304
    %v306 = vpop.f32.mrb[0].mxu0
    %v307 = vadd.f32 %v148, %v306
    %v308 = vpop.f32.mrb[0].mxu0
    %v309 = vadd.f32 %v144, %v308
    %v310 = vpop.f32.mrb[0].mxu0
    %v311 = vadd.f32 %v148, %v310
    %312 = vdwg.mxu0
    %313 = vmatprep.subr.bf16.mxu0 %v204
    %314 = vmatpush1.bf16.msra.mxu0 %v203
    %315 = vmatprep.subr.bf16.mxu0 %v210
    %316 = vmatpush1.bf16.msra.mxu0 %v209
    %317 = vmatprep.subr.bf16.mxu0 0
    %318 = vmatpush1.bf16.msra.mxu0 0
    %319 = vmatprep.subr.bf16.mxu0 0
    %320 = vmatpush1.bf16.msra.mxu0 0
    %321 = vmatprep.subr.bf16.mxu0 0
    %322 = vmatpush1.bf16.msra.mxu0 0
    %323 = vmatprep.subr.bf16.mxu0 0
    %324 = vmatpush1.bf16.msra.mxu0 0
    %325 = vmatprep.subr.bf16.mxu0 0
    %326 = vmatpush1.bf16.msra.mxu0 0
    %327 = vmatprep.subr.bf16.mxu0 0
    %328 = vmatpush1.bf16.msra.mxu0 0
    %329 = vmatprep.subr.bf16.mxu0 0
    %330 = vmatpush1.bf16.msra.mxu0 0
    %331 = vmatprep.subr.bf16.mxu0 0
    %332 = vmatpush1.bf16.msra.mxu0 0
    %333 = vmatprep.subr.bf16.mxu0 0
    %334 = vmatpush1.bf16.msra.mxu0 0
    %335 = vmatprep.subr.bf16.mxu0 0
    %336 = vmatpush1.bf16.msra.mxu0 0
    %337 = vmatprep.subr.bf16.mxu0 0
    %338 = vmatpush1.bf16.msra.mxu0 0
    %339 = vmatprep.subr.bf16.mxu0 0
    %340 = vmatpush1.bf16.msra.mxu0 0
    %341 = vmatprep.subr.bf16.mxu0 0
    %342 = vmatpush1.bf16.msra.mxu0 0
    %343 = vmatprep.subr.bf16.mxu0 0
    %344 = vmatpush1.bf16.msra.mxu0 0
    %345 = vmatprep.mubr.bf16.mxu0 0
    %346 = vmatmul.mubr.bf16.gmra.mrb[0].mxu0 %v225
    %v347 = vpop.f32.mrb[0].mxu0
    %v348 = vadd.f32 %v152, %v347
    %v349 = vpop.f32.mrb[0].mxu0
    %v350 = vadd.f32 %v156, %v349
    %v351 = vpop.f32.mrb[0].mxu0
    %v352 = vadd.f32 %v152, %v351
    %v353 = vpop.f32.mrb[0].mxu0
    %v354 = vadd.f32 %v156, %v353
    %355 = vdwg.mxu0
    %v356 = vpack.c.bf16 %v266, %v262
    %v357 = vpack.c.bf16 %v268, %v264
    %v358 = vpack.c.bf16 %v309, %v305
    %v359 = vpack.c.bf16 %v311, %v307
    %v360 = vpack.c.bf16 %v352, %v348
    %v361 = vpack.c.bf16 %v354, %v350
    %v362 = vld [vmem:[%s4] sm:$0xf]
    %v363 = vld [vmem:[%s4 + $0x4] sm:$0xf]
    %v364 = vld [vmem:[%s4 + $0x8] sm:$0xf]
    %v365 = vld [vmem:[%s4 + $0xc] sm:$0xf]
    %v366 = vld [vmem:[%s4 + $0x10] sm:$0xf]
    %v367 = vld [vmem:[%s4 + $0x14] sm:$0xf]
    %v368 = vld [vmem:[%s4 + $0x18] sm:$0xf]
    %v369 = vld [vmem:[%s4 + $0x1c] sm:$0xf]
    %v370 = vld [vmem:[%s4 + $0x20] sm:$0xf]
    %v371 = vld [vmem:[%s4 + $0x24] sm:$0xf]
    %v372 = vld [vmem:[%s4 + $0x28] sm:$0xf]
    %v373 = vld [vmem:[%s4 + $0x2c] sm:$0xf]
    %v374 = vld [vmem:[%s4 + $0x30] sm:$0xf]
    %v375 = vld [vmem:[%s4 + $0x34] sm:$0xf]
    %v376 = vld [vmem:[%s4 + $0x38] sm:$0xf]
    %v377 = vld [vmem:[%s4 + $0x3c] sm:$0xf]
    %v378 = vld [vmem:[%s4 + $0x40] sm:$0xf]
    %v379 = vld [vmem:[%s4 + $0x44] sm:$0xf]
    %v380 = vld [vmem:[%s4 + $0x48] sm:$0xf]
    %v381 = vld [vmem:[%s4 + $0x4c] sm:$0xf]
    %v382 = vld [vmem:[%s4 + $0x50] sm:$0xf]
    %v383 = vld [vmem:[%s4 + $0x54] sm:$0xf]
    %v384 = vld [vmem:[%s4 + $0x58] sm:$0xf]
    %v385 = vld [vmem:[%s4 + $0x5c] sm:$0xf]
    %v386 = vld [vmem:[%s4 + $0x60] sm:$0xf]
    %v387 = vld [vmem:[%s4 + $0x64] sm:$0xf]
    %v388 = vld [vmem:[%s4 + $0x68] sm:$0xf]
    %v389 = vld [vmem:[%s4 + $0x6c] sm:$0xf]
    %v390 = vld [vmem:[%s4 + $0x70] sm:$0xf]
    %v391 = vld [vmem:[%s4 + $0x74] sm:$0xf]
    %v392 = vld [vmem:[%s4 + $0x78] sm:$0xf]
    %v393 = vld [vmem:[%s4 + $0x7c] sm:$0xf]
    %394 = vmatprep.subr.bf16.mxu0 0
    %395 = vmatpush1.bf16.xpose.msra.mxu0 %v358
    %396 = vmatprep.subr.bf16.mxu0 0
    %397 = vmatpush1.bf16.xpose.msra.mxu0 0
    %398 = vmatprep.subr.bf16.mxu0 0
    %399 = vmatpush1.bf16.xpose.msra.mxu0 0
    %400 = vmatprep.subr.bf16.mxu0 0
    %401 = vmatpush1.bf16.xpose.msra.mxu0 0
    %402 = vmatprep.subr.bf16.mxu0 0
    %403 = vmatpush1.bf16.xpose.msra.mxu0 0
    %404 = vmatprep.subr.bf16.mxu0 0
    %405 = vmatpush1.bf16.xpose.msra.mxu0 0
    %406 = vmatprep.subr.bf16.mxu0 0
    %407 = vmatpush1.bf16.xpose.msra.mxu0 0
    %408 = vmatprep.subr.bf16.mxu0 0
    %409 = vmatpush1.bf16.xpose.msra.mxu0 0
    %410 = vmatprep.subr.bf16.mxu0 0
    %411 = vmatpush1.bf16.xpose.msra.mxu0 0
    %412 = vmatprep.subr.bf16.mxu0 0
    %413 = vmatpush1.bf16.xpose.msra.mxu0 0
    %414 = vmatprep.subr.bf16.mxu0 0
    %415 = vmatpush1.bf16.xpose.msra.mxu0 0
    %416 = vmatprep.subr.bf16.mxu0 0
    %417 = vmatpush1.bf16.xpose.msra.mxu0 0
    %418 = vmatprep.subr.bf16.mxu0 0
    %419 = vmatpush1.bf16.xpose.msra.mxu0 0
    %420 = vmatprep.subr.bf16.mxu0 0
    %421 = vmatpush1.bf16.xpose.msra.mxu0 0
    %422 = vmatprep.subr.bf16.mxu0 0
    %423 = vmatpush1.bf16.xpose.msra.mxu0 0
    %424 = vmatprep.subr.bf16.mxu0 0
    %425 = vmatpush1.bf16.xpose.msra.mxu0 0
    %426 = vmatprep.mubr.bf16.mxu0 0
    %427 = vmatmul.mubr.bf16.gmra.mrb[0].mxu0 %v356
    %v428 = vpop.f32.mrb[0].mxu0
    %v429 = vadd.f32 %v117, %v428
    %v430 = vpop.f32.mrb[0].mxu0
    %v431 = vpop.f32.mrb[0].mxu0
    %v432 = vadd.f32 %v118, %v431
    %v433 = vpop.f32.mrb[0].mxu0
    %434 = vdwg.mxu0
    %vm435 = vcmask 130048
    %v436 = vsel %vm435, %v429, -inf
    %437 = vmax.xlane.f32.xlu0 %v436
    %v438 = vpop.xlane.xlu0 %437
    %v439 = vsel %vm435, %v432, -inf
    %440 = vmax.xlane.f32.xlu0 %v439
    %v441 = vpop.xlane.xlu0 %440
    %v442 = vsub.f32 %v429, %v438
    %v443 = vsub.f32 %v432, %v441
    %v444 = vmul.f32 %v442, 1.442695
    %v445 = vpow.pop %v444
    %v446 = vmul.f32 %v443, 1.442695
    %v447 = vpow.pop %v446
    %v448 = vsel %vm435, %v445, 0.0
    %449 = vadd.xlane.f32.xlu0 %v448
    %v450 = vpop.xlane.xlu0 %449
    %v451 = vsel %vm435, %v447, 0.0
    %452 = vadd.xlane.f32.xlu0 %v451
    %v453 = vpop.xlane.xlu0 %452
    %v454 = vrcp.pop %v450
    %v455 = vrcp.pop %v453
    %v456 = vmul.f32 %v445, %v454
    %v457 = vmul.f32 %v447, %v455
    %v458 = vpack.c.bf16 %v457, %v456
    %v460 = vsel %vm435, %v458, 0
    %462 = vmatprep.subr.bf16.mxu0 0
    %463 = vmatpush1.bf16.msra.mxu0 %v360
    %464 = vmatprep.subr.bf16.mxu0 0
    %465 = vmatpush1.bf16.msra.mxu0 0
    %466 = vmatprep.subr.bf16.mxu0 0
    %467 = vmatpush1.bf16.msra.mxu0 0
    %468 = vmatprep.subr.bf16.mxu0 0
    %469 = vmatpush1.bf16.msra.mxu0 0
    %470 = vmatprep.subr.bf16.mxu0 0
    %471 = vmatpush1.bf16.msra.mxu0 0
    %472 = vmatprep.subr.bf16.mxu0 0
    %473 = vmatpush1.bf16.msra.mxu0 0
    %474 = vmatprep.subr.bf16.mxu0 0
    %475 = vmatpush1.bf16.msra.mxu0 0
    %476 = vmatprep.subr.bf16.mxu0 0
    %477 = vmatpush1.bf16.msra.mxu0 0
    %478 = vmatprep.subr.bf16.mxu0 0
    %479 = vmatpush1.bf16.msra.mxu0 0
    %480 = vmatprep.subr.bf16.mxu0 0
    %481 = vmatpush1.bf16.msra.mxu0 0
    %482 = vmatprep.subr.bf16.mxu0 0
    %483 = vmatpush1.bf16.msra.mxu0 0
    %484 = vmatprep.subr.bf16.mxu0 0
    %485 = vmatpush1.bf16.msra.mxu0 0
    %486 = vmatprep.subr.bf16.mxu0 0
    %487 = vmatpush1.bf16.msra.mxu0 0
    %488 = vmatprep.subr.bf16.mxu0 0
    %489 = vmatpush1.bf16.msra.mxu0 0
    %490 = vmatprep.subr.bf16.mxu0 0
    %491 = vmatpush1.bf16.msra.mxu0 0
    %492 = vmatprep.subr.bf16.mxu0 0
    %493 = vmatpush1.bf16.msra.mxu0 0
    %494 = vmatprep.mubr.bf16.mxu0 0
    %495 = vmatmul.mubr.bf16.gmra.mrb[0].mxu0 %v460
    %v496 = vpop.f32.mrb[0].mxu0
    %v497 = vadd.f32 0.0, %v496
    %v498 = vpop.f32.mrb[0].mxu0
    %v499 = vpop.f32.mrb[0].mxu0
    %v500 = vadd.f32 0.0, %v499
    %v501 = vpop.f32.mrb[0].mxu0
    %502 = vdwg.mxu0
    %v503 = vpack.c.bf16 %v500, %v497
    %504 = vmatprep.subr.bf16.mxu0 0
    %505 = vmatpush1.bf16.xpose.msra.mxu0 %v359
    %506 = vmatprep.subr.bf16.mxu0 0
    %507 = vmatpush1.bf16.xpose.msra.mxu0 0
    %508 = vmatprep.subr.bf16.mxu0 0
    %509 = vmatpush1.bf16.xpose.msra.mxu0 0
    %510 = vmatprep.subr.bf16.mxu0 0
    %511 = vmatpush1.bf16.xpose.msra.mxu0 0
    %512 = vmatprep.subr.bf16.mxu0 0
    %513 = vmatpush1.bf16.xpose.msra.mxu0 0
    %514 = vmatprep.subr.bf16.mxu0 0
    %515 = vmatpush1.bf16.xpose.msra.mxu0 0
    %516 = vmatprep.subr.bf16.mxu0 0
    %517 = vmatpush1.bf16.xpose.msra.mxu0 0
    %518 = vmatprep.subr.bf16.mxu0 0
    %519 = vmatpush1.bf16.xpose.msra.mxu0 0
    %520 = vmatprep.subr.bf16.mxu0 0
    %521 = vmatpush1.bf16.xpose.msra.mxu0 0
    %522 = vmatprep.subr.bf16.mxu0 0
    %523 = vmatpush1.bf16.xpose.msra.mxu0 0
    %524 = vmatprep.subr.bf16.mxu0 0
    %525 = vmatpush1.bf16.xpose.msra.mxu0 0
    %526 = vmatprep.subr.bf16.mxu0 0
    %527 = vmatpush1.bf16.xpose.msra.mxu0 0
    %528 = vmatprep.subr.bf16.mxu0 0
    %529 = vmatpush1.bf16.xpose.msra.mxu0 0
    %530 = vmatprep.subr.bf16.mxu0 0
    %531 = vmatpush1.bf16.xpose.msra.mxu0 0
    %532 = vmatprep.subr.bf16.mxu0 0
    %533 = vmatpush1.bf16.xpose.msra.mxu0 0
    %534 = vmatprep.subr.bf16.mxu0 0
    %535 = vmatpush1.bf16.xpose.msra.mxu0 0
    %536 = vmatprep.mubr.bf16.mxu0 0
    %537 = vmatmul.mubr.bf16.gmra.mrb[0].mxu0 %v357
    %v538 = vpop.f32.mrb[0].mxu0
    %v539 = vadd.f32 %v117, %v538
    %v540 = vpop.f32.mrb[0].mxu0
    %v541 = vpop.f32.mrb[0].mxu0
    %v542 = vadd.f32 %v118, %v541
    %v543 = vpop.f32.mrb[0].mxu0
    %544 = vdwg.mxu0
    %v545 = vsel %vm435, %v539, -inf
    %546 = vmax.xlane.f32.xlu0 %v545
    %v547 = vpop.xlane.xlu0 %546
    %v548 = vsel %vm435, %v542, -inf
    %549 = vmax.xlane.f32.xlu0 %v548
    %v550 = vpop.xlane.xlu0 %549
    %v551 = vsub.f32 %v539, %v547
    %v552 = vsub.f32 %v542, %v550
    %v553 = vmul.f32 %v551, 1.442695
    %v554 = vpow.pop %v553
    %v555 = vmul.f32 %v552, 1.442695
    %v556 = vpow.pop %v555
    %v557 = vsel %vm435, %v554, 0.0
    %558 = vadd.xlane.f32.xlu0 %v557
    %v559 = vpop.xlane.xlu0 %558
    %v560 = vsel %vm435, %v556, 0.0
    %561 = vadd.xlane.f32.xlu0 %v560
    %v562 = vpop.xlane.xlu0 %561
    %v563 = vrcp.pop %v559
    %v564 = vrcp.pop %v562
    %v565 = vmul.f32 %v554, %v563
    %v566 = vmul.f32 %v556, %v564
    %v567 = vpack.c.bf16 %v566, %v565
    %v569 = vsel %vm435, %v567, 0
    %571 = vmatprep.subr.bf16.mxu0 0
    %572 = vmatpush1.bf16.msra.mxu0 %v361
    %573 = vmatprep.subr.bf16.mxu0 0
    %574 = vmatpush1.bf16.msra.mxu0 0
    %575 = vmatprep.subr.bf16.mxu0 0
    %576 = vmatpush1.bf16.msra.mxu0 0
    %577 = vmatprep.subr.bf16.mxu0 0
    %578 = vmatpush1.bf16.msra.mxu0 0
    %579 = vmatprep.subr.bf16.mxu0 0
    %580 = vmatpush1.bf16.msra.mxu0 0
    %581 = vmatprep.subr.bf16.mxu0 0
    %582 = vmatpush1.bf16.msra.mxu0 0
    %583 = vmatprep.subr.bf16.mxu0 0
    %584 = vmatpush1.bf16.msra.mxu0 0
    %585 = vmatprep.subr.bf16.mxu0 0
    %586 = vmatpush1.bf16.msra.mxu0 0
    %587 = vmatprep.subr.bf16.mxu0 0
    %588 = vmatpush1.bf16.msra.mxu0 0
    %589 = vmatprep.subr.bf16.mxu0 0
    %590 = vmatpush1.bf16.msra.mxu0 0
    %591 = vmatprep.subr.bf16.mxu0 0
    %592 = vmatpush1.bf16.msra.mxu0 0
    %593 = vmatprep.subr.bf16.mxu0 0
    %594 = vmatpush1.bf16.msra.mxu0 0
    %595 = vmatprep.subr.bf16.mxu0 0
    %596 = vmatpush1.bf16.msra.mxu0 0
    %597 = vmatprep.subr.bf16.mxu0 0
    %598 = vmatpush1.bf16.msra.mxu0 0
    %599 = vmatprep.subr.bf16.mxu0 0
    %600 = vmatpush1.bf16.msra.mxu0 0
    %601 = vmatprep.subr.bf16.mxu0 0
    %602 = vmatpush1.bf16.msra.mxu0 0
    %603 = vmatprep.mubr.bf16.mxu0 0
    %604 = vmatmul.mubr.bf16.gmra.mrb[0].mxu0 %v569
    %v605 = vpop.f32.mrb[0].mxu0
    %v606 = vadd.f32 0.0, %v605
    %v607 = vpop.f32.mrb[0].mxu0
    %v608 = vpop.f32.mrb[0].mxu0
    %v609 = vadd.f32 0.0, %v608
    %v610 = vpop.f32.mrb[0].mxu0
    %611 = vdwg.mxu0
    %v612 = vpack.c.bf16 %v609, %v606
    %v629 = vunpack.c.l.b16 %v378
    %v630 = vunpack.c.l.b16 %v379
    %v631 = vunpack.c.l.b16 %v380
    %v632 = vunpack.c.l.b16 %v381
    %v633 = vunpack.c.l.b16 %v382
    %v634 = vunpack.c.l.b16 %v383
    %v635 = vunpack.c.l.b16 %v384
    %v636 = vunpack.c.l.b16 %v385
    %v637 = vunpack.c.l.b16 %v386
    %v638 = vunpack.c.l.b16 %v387
    %v639 = vunpack.c.l.b16 %v388
    %v640 = vunpack.c.l.b16 %v389
    %v641 = vunpack.c.l.b16 %v390
    %v642 = vunpack.c.l.b16 %v391
    %v643 = vunpack.c.l.b16 %v392
    %v644 = vunpack.c.l.b16 %v393
    %v645 = vpack.c.b16 %v630, %v629
    %v646 = vpack.c.b16 %v632, %v631
    %v647 = vpack.c.b16 %v634, %v633
    %v648 = vpack.c.b16 %v636, %v635
    %v649 = vpack.c.b16 %v638, %v637
    %v650 = vpack.c.b16 %v640, %v639
    %v651 = vpack.c.b16 %v642, %v641
    %v652 = vpack.c.b16 %v644, %v643
    %661 = vmatprep.subr.bf16.mxu0 0
    %662 = vmatpush1.bf16.msra.mxu0 %v645
    %663 = vmatprep.subr.bf16.mxu0 0
    %664 = vmatpush1.bf16.msra.mxu0 %v646
    %665 = vmatprep.subr.bf16.mxu0 0
    %666 = vmatpush1.bf16.msra.mxu0 %v647
    %667 = vmatprep.subr.bf16.mxu0 0
    %668 = vmatpush1.bf16.msra.mxu0 %v648
    %669 = vmatprep.subr.bf16.mxu0 0
    %670 = vmatpush1.bf16.msra.mxu0 %v649
    %671 = vmatprep.subr.bf16.mxu0 0
    %672 = vmatpush1.bf16.msra.mxu0 %v650
    %673 = vmatprep.subr.bf16.mxu0 0
    %674 = vmatpush1.bf16.msra.mxu0 %v651
    %675 = vmatprep.subr.bf16.mxu0 0
    %676 = vmatpush1.bf16.msra.mxu0 %v652
    %677 = vmatprep.subr.bf16.mxu0 0
    %678 = vmatpush1.bf16.msra.mxu0 0
    %679 = vmatprep.subr.bf16.mxu0 0
    %680 = vmatpush1.bf16.msra.mxu0 0
    %681 = vmatprep.subr.bf16.mxu0 0
    %682 = vmatpush1.bf16.msra.mxu0 0
    %683 = vmatprep.subr.bf16.mxu0 0
    %684 = vmatpush1.bf16.msra.mxu0 0
    %685 = vmatprep.subr.bf16.mxu0 0
    %686 = vmatpush1.bf16.msra.mxu0 0
    %687 = vmatprep.subr.bf16.mxu0 0
    %688 = vmatpush1.bf16.msra.mxu0 0
    %689 = vmatprep.subr.bf16.mxu0 0
    %690 = vmatpush1.bf16.msra.mxu0 0
    %691 = vmatprep.subr.bf16.mxu0 0
    %692 = vmatpush1.bf16.msra.mxu0 0
    %693 = vmatprep.mubr.bf16.mxu0 0
    %694 = vmatmul.mubr.bf16.gmra.mrb[0].mxu0 %v612
    %v695 = vpop.f32.mrb[0].mxu0
    %v696 = vadd.f32 0.0, %v695
    %v697 = vpop.f32.mrb[0].mxu0
    %v698 = vpop.f32.mrb[0].mxu0
    %v699 = vadd.f32 0.0, %v698
    %v700 = vpop.f32.mrb[0].mxu0
    %701 = vdwg.mxu0
    %v718 = vunpack.c.l.b16 %v362
    %v719 = vunpack.c.l.b16 %v363
    %v720 = vunpack.c.l.b16 %v364
    %v721 = vunpack.c.l.b16 %v365
    %v722 = vunpack.c.l.b16 %v366
    %v723 = vunpack.c.l.b16 %v367
    %v724 = vunpack.c.l.b16 %v368
    %v725 = vunpack.c.l.b16 %v369
    %v726 = vunpack.c.l.b16 %v370
    %v727 = vunpack.c.l.b16 %v371
    %v728 = vunpack.c.l.b16 %v372
    %v729 = vunpack.c.l.b16 %v373
    %v730 = vunpack.c.l.b16 %v374
    %v731 = vunpack.c.l.b16 %v375
    %v732 = vunpack.c.l.b16 %v376
    %v733 = vunpack.c.l.b16 %v377
    %v734 = vpack.c.b16 %v719, %v718
    %v735 = vpack.c.b16 %v721, %v720
    %v736 = vpack.c.b16 %v723, %v722
    %v737 = vpack.c.b16 %v725, %v724
    %v738 = vpack.c.b16 %v727, %v726
    %v739 = vpack.c.b16 %v729, %v728
    %v740 = vpack.c.b16 %v731, %v730
    %v741 = vpack.c.b16 %v733, %v732
    %750 = vmatprep.subr.bf16.mxu0 0
    %751 = vmatpush1.bf16.msra.mxu0 %v734
    %752 = vmatprep.subr.bf16.mxu0 0
    %753 = vmatpush1.bf16.msra.mxu0 %v735
    %754 = vmatprep.subr.bf16.mxu0 0
    %755 = vmatpush1.bf16.msra.mxu0 %v736
    %756 = vmatprep.subr.bf16.mxu0 0
    %757 = vmatpush1.bf16.msra.mxu0 %v737
    %758 = vmatprep.subr.bf16.mxu0 0
    %759 = vmatpush1.bf16.msra.mxu0 %v738
    %760 = vmatprep.subr.bf16.mxu0 0
    %761 = vmatpush1.bf16.msra.mxu0 %v739
    %762 = vmatprep.subr.bf16.mxu0 0
    %763 = vmatpush1.bf16.msra.mxu0 %v740
    %764 = vmatprep.subr.bf16.mxu0 0
    %765 = vmatpush1.bf16.msra.mxu0 %v741
    %766 = vmatprep.subr.bf16.mxu0 0
    %767 = vmatpush1.bf16.msra.mxu0 0
    %768 = vmatprep.subr.bf16.mxu0 0
    %769 = vmatpush1.bf16.msra.mxu0 0
    %770 = vmatprep.subr.bf16.mxu0 0
    %771 = vmatpush1.bf16.msra.mxu0 0
    %772 = vmatprep.subr.bf16.mxu0 0
    %773 = vmatpush1.bf16.msra.mxu0 0
    %774 = vmatprep.subr.bf16.mxu0 0
    %775 = vmatpush1.bf16.msra.mxu0 0
    %776 = vmatprep.subr.bf16.mxu0 0
    %777 = vmatpush1.bf16.msra.mxu0 0
    %778 = vmatprep.subr.bf16.mxu0 0
    %779 = vmatpush1.bf16.msra.mxu0 0
    %780 = vmatprep.subr.bf16.mxu0 0
    %781 = vmatpush1.bf16.msra.mxu0 0
    %782 = vmatprep.mubr.bf16.mxu0 0
    %783 = vmatmul.mubr.bf16.gmra.mrb[0].mxu0 %v503
    %v784 = vpop.f32.mrb[0].mxu0
    %v785 = vadd.f32 %v696, %v784
    %v786 = vpop.f32.mrb[0].mxu0
    %v787 = vpop.f32.mrb[0].mxu0
    %v788 = vadd.f32 %v699, %v787
    %v789 = vpop.f32.mrb[0].mxu0
    %790 = vdwg.mxu0
    %v791 = vld [vmem:[%s5] sm:$0x1]
    %v792 = vlaneseq
    %v793 = vshrl.u32 %v792, 7
    %v794 = vsub.s32 0, %v793
    %v795 = vrot.slane %v791, %v794
    %v796 = vadd.f32 %v785, %v795
    %v797 = vadd.f32 %v788, %v795
    %v798 = vadd.f32 %v74, %v796
    %v799 = vadd.f32 %v75, %v797
    %v800 = vld [vmem:[%s6] sm:$0x1]
    %v801 = vld [vmem:[%s7] sm:$0x1]
    %v802 = vsel %vm223, %v798, 0.0
    %803 = vadd.xlane.f32.xlu0 %v802
    %v804 = vpop.xlane.xlu0 %803
    %v805 = vsel %vm223, %v799, 0.0
    %806 = vadd.xlane.f32.xlu0 %v805
    %v807 = vpop.xlane.xlu0 %806
    %v808 = vrcp.pop 32.0
    %v809 = vmul.f32 %v804, %v808
    %v810 = vmul.f32 %v807, %v808
    %v811 = vsub.f32 %v798, %v809
    %v812 = vsub.f32 %v799, %v810
    %v813 = vmul.f32 %v811, %v811
    %v814 = vmul.f32 %v812, %v812
    %v815 = vsel %vm223, %v813, 0.0
    %816 = vadd.xlane.f32.xlu0 %v815
    %v817 = vpop.xlane.xlu0 %816
    %v818 = vsel %vm223, %v814, 0.0
    %819 = vadd.xlane.f32.xlu0 %v818
    %v820 = vpop.xlane.xlu0 %819
    %v821 = vmul.f32 %v817, %v808
    %v822 = vmul.f32 %v820, %v808
    %v823 = vadd.f32 %v821, 1e-12
    %v824 = vadd.f32 %v822, 1e-12
    %v825 = vrsqrt.pop %v823
    %v826 = vrsqrt.pop %v824
    %v827 = vmul.f32 %v811, %v825
    %v828 = vmul.f32 %v812, %v826
    %v829 = vlaneseq
    %v830 = vshrl.u32 %v829, 7
    %v831 = vsub.s32 0, %v830
    %v832 = vrot.slane %v800, %v831
    %v833 = vmul.f32 %v827, %v832
    %v834 = vmul.f32 %v828, %v832
    %v835 = vlaneseq
    %v836 = vshrl.u32 %v835, 7
    %v837 = vsub.s32 0, %v836
    %v838 = vrot.slane %v801, %v837
    %v839 = vadd.f32 %v833, %v838
    %v840 = vadd.f32 %v834, %v838
    %v841 = vpack.c.bf16 %v840, %v839
    %v842 = vld [vmem:[%s8] sm:$0xf]
    %v843 = vld [vmem:[%s8 + $0x4] sm:$0xf]
    %v844 = vld [vmem:[%s8 + $0x8] sm:$0xf]
    %v845 = vld [vmem:[%s8 + $0xc] sm:$0xf]
    %v846 = vld [vmem:[%s9] sm:$0x1]
    %v847 = vlaneseq
    %v848 = vshrl.u32 %v847, 7
    %v849 = vsub.s32 0, %v848
    %v850 = vrot.slane %v846, %v849
    %v855 = vunpack.c.l.b16 %v842
    %v856 = vunpack.c.l.b16 %v843
    %v857 = vunpack.c.l.b16 %v844
    %v858 = vunpack.c.l.b16 %v845
    %v859 = vpack.c.b16 %v856, %v855
    %v860 = vpack.c.b16 %v858, %v857
    %v864 = vsel %vm223, %v841, 0
    %866 = vmatprep.subr.bf16.mxu0 0
    %867 = vmatpush1.bf16.msra.mxu0 %v859
    %868 = vmatprep.subr.bf16.mxu0 0
    %869 = vmatpush1.bf16.msra.mxu0 %v860
    %870 = vmatprep.subr.bf16.mxu0 0
    %871 = vmatpush1.bf16.msra.mxu0 0
    %872 = vmatprep.subr.bf16.mxu0 0
    %873 = vmatpush1.bf16.msra.mxu0 0
    %874 = vmatprep.subr.bf16.mxu0 0
    %875 = vmatpush1.bf16.msra.mxu0 0
    %876 = vmatprep.subr.bf16.mxu0 0
    %877 = vmatpush1.bf16.msra.mxu0 0
    %878 = vmatprep.subr.bf16.mxu0 0
    %879 = vmatpush1.bf16.msra.mxu0 0
    %880 = vmatprep.subr.bf16.mxu0 0
    %881 = vmatpush1.bf16.msra.mxu0 0
    %882 = vmatprep.subr.bf16.mxu0 0
    %883 = vmatpush1.bf16.msra.mxu0 0
    %884 = vmatprep.subr.bf16.mxu0 0
    %885 = vmatpush1.bf16.msra.mxu0 0
    %886 = vmatprep.subr.bf16.mxu0 0
    %887 = vmatpush1.bf16.msra.mxu0 0
    %888 = vmatprep.subr.bf16.mxu0 0
    %889 = vmatpush1.bf16.msra.mxu0 0
    %890 = vmatprep.subr.bf16.mxu0 0
    %891 = vmatpush1.bf16.msra.mxu0 0
    %892 = vmatprep.subr.bf16.mxu0 0
    %893 = vmatpush1.bf16.msra.mxu0 0
    %894 = vmatprep.subr.bf16.mxu0 0
    %895 = vmatpush1.bf16.msra.mxu0 0
    %896 = vmatprep.subr.bf16.mxu0 0
    %897 = vmatpush1.bf16.msra.mxu0 0
    %898 = vmatprep.mubr.bf16.mxu0 0
    %899 = vmatmul.mubr.bf16.gmra.mrb[0].mxu0 %v864
    %v900 = vpop.f32.mrb[0].mxu0
    %v901 = vadd.f32 %v850, %v900
    %v902 = vpop.f32.mrb[0].mxu0
    %v903 = vpop.f32.mrb[0].mxu0
    %v904 = vadd.f32 %v850, %v903
    %v905 = vpop.f32.mrb[0].mxu0
    %906 = vdwg.mxu0
    %v907 = vmul.f32 %v901, %v901
    %v908 = vmul.f32 %v904, %v904
    %v909 = vmul.f32 %v901, %v907
    %v910 = vmul.f32 %v904, %v908
    %v911 = vmul.f32 %v909, 0.044715
    %v912 = vmul.f32 %v910, 0.044715
    %v913 = vadd.f32 %v901, %v911
    %v914 = vadd.f32 %v904, %v912
    %v915 = vmul.f32 %v913, 0.7978846
    %v916 = vmul.f32 %v914, 0.7978846
    %v917 = vtanh.pop %v915
    %v918 = vtanh.pop %v916
    %v919 = vadd.f32 %v917, 1.0
    %v920 = vadd.f32 %v918, 1.0
    %v921 = vmul.f32 %v919, 0.5
    %v922 = vmul.f32 %v920, 0.5
    %v923 = vmul.f32 %v901, %v921
    %v924 = vmul.f32 %v904, %v922
    %v925 = vpack.c.bf16 %v924, %v923
    %v926 = vld [vmem:[%s10] sm:$0xf]
    %v927 = vld [vmem:[%s10 + $0x4] sm:$0xf]
    %v928 = vld [vmem:[%s10 + $0x8] sm:$0xf]
    %v929 = vld [vmem:[%s10 + $0xc] sm:$0xf]
    %v930 = vld [vmem:[%s10 + $0x10] sm:$0xf]
    %v931 = vld [vmem:[%s10 + $0x14] sm:$0xf]
    %v932 = vld [vmem:[%s10 + $0x18] sm:$0xf]
    %v933 = vld [vmem:[%s10 + $0x1c] sm:$0xf]
    %v934 = vld [vmem:[%s11] sm:$0x1]
    %v935 = vlaneseq
    %v936 = vshrl.u32 %v935, 7
    %v937 = vsub.s32 0, %v936
    %v938 = vrot.slane %v934, %v937
    %v947 = vunpack.c.l.b16 %v926
    %v948 = vunpack.c.l.b16 %v927
    %v949 = vunpack.c.l.b16 %v928
    %v950 = vunpack.c.l.b16 %v929
    %v951 = vunpack.c.l.b16 %v930
    %v952 = vunpack.c.l.b16 %v931
    %v953 = vunpack.c.l.b16 %v932
    %v954 = vunpack.c.l.b16 %v933
    %v955 = vpack.c.b16 %v948, %v947
    %v956 = vpack.c.b16 %v950, %v949
    %v957 = vpack.c.b16 %v952, %v951
    %v958 = vpack.c.b16 %v954, %v953
    %vm963 = vcmask 523264
    %v965 = vsel %vm963, %v925, 0
    %967 = vmatprep.subr.bf16.mxu0 0
    %968 = vmatpush1.bf16.msra.mxu0 %v955
    %969 = vmatprep.subr.bf16.mxu0 0
    %970 = vmatpush1.bf16.msra.mxu0 %v956
    %971 = vmatprep.subr.bf16.mxu0 0
    %972 = vmatpush1.bf16.msra.mxu0 %v957
    %973 = vmatprep.subr.bf16.mxu0 0
    %974 = vmatpush1.bf16.msra.mxu0 %v958
    %975 = vmatprep.subr.bf16.mxu0 0
    %976 = vmatpush1.bf16.msra.mxu0 0
    %977 = vmatprep.subr.bf16.mxu0 0
    %978 = vmatpush1.bf16.msra.mxu0 0
    %979 = vmatprep.subr.bf16.mxu0 0
    %980 = vmatpush1.bf16.msra.mxu0 0
    %981 = vmatprep.subr.bf16.mxu0 0
    %982 = vmatpush1.bf16.msra.mxu0 0
    %983 = vmatprep.subr.bf16.mxu0 0
    %984 = vmatpush1.bf16.msra.mxu0 0
    %985 = vmatprep.subr.bf16.mxu0 0
    %986 = vmatpush1.bf16.msra.mxu0 0
    %987 = vmatprep.subr.bf16.mxu0 0
    %988 = vmatpush1.bf16.msra.mxu0 0
    %989 = vmatprep.subr.bf16.mxu0 0
    %990 = vmatpush1.bf16.msra.mxu0 0
    %991 = vmatprep.subr.bf16.mxu0 0
    %992 = vmatpush1.bf16.msra.mxu0 0
    %993 = vmatprep.subr.bf16.mxu0 0
    %994 = vmatpush1.bf16.msra.mxu0 0
    %995 = vmatprep.subr.bf16.mxu0 0
    %996 = vmatpush1.bf16.msra.mxu0 0
    %997 = vmatprep.subr.bf16.mxu0 0
    %998 = vmatpush1.bf16.msra.mxu0 0
    %999 = vmatprep.mubr.bf16.mxu0 0
    %1000 = vmatmul.mubr.bf16.gmra.mrb[0].mxu0 %v965
    %v1001 = vpop.f32.mrb[0].mxu0
    %v1002 = vadd.f32 %v938, %v1001
    %v1003 = vpop.f32.mrb[0].mxu0
    %v1004 = vpop.f32.mrb[0].mxu0
    %v1005 = vadd.f32 %v938, %v1004
    %v1006 = vpop.f32.mrb[0].mxu0
    %1007 = vdwg.mxu0
    %v1008 = vadd.f32 %v839, %v1002
    %v1009 = vadd.f32 %v840, %v1005
    %v1010 = vld [vmem:[%s12] sm:$0x1]
    %v1011 = vld [vmem:[%s13] sm:$0x1]
    %v1012 = vsel %vm223, %v1008, 0.0
    %1013 = vadd.xlane.f32.xlu0 %v1012
    %v1014 = vpop.xlane.xlu0 %1013
    %v1015 = vsel %vm223, %v1009, 0.0
    %1016 = vadd.xlane.f32.xlu0 %v1015
    %v1017 = vpop.xlane.xlu0 %1016
    %v1018 = vmul.f32 %v1014, %v808
    %v1019 = vmul.f32 %v1017, %v808
    %v1020 = vsub.f32 %v1008, %v1018
    %v1021 = vsub.f32 %v1009, %v1019
    %v1022 = vmul.f32 %v1020, %v1020
    %v1023 = vmul.f32 %v1021, %v1021
    %v1024 = vsel %vm223, %v1022, 0.0
    %1025 = vadd.xlane.f32.xlu0 %v1024
    %v1026 = vpop.xlane.xlu0 %1025
    %v1027 = vsel %vm223, %v1023, 0.0
    %1028 = vadd.xlane.f32.xlu0 %v1027
    %v1029 = vpop.xlane.xlu0 %1028
    %v1030 = vmul.f32 %v1026, %v808
    %v1031 = vmul.f32 %v1029, %v808
    %v1032 = vadd.f32 %v1030, 1e-12
    %v1033 = vadd.f32 %v1031, 1e-12
    %v1034 = vrsqrt.pop %v1032
    %v1035 = vrsqrt.pop %v1033
    %v1036 = vmul.f32 %v1020, %v1034
    %v1037 = vmul.f32 %v1021, %v1035
    %v1038 = vlaneseq
    %v1039 = vshrl.u32 %v1038, 7
    %v1040 = vsub.s32 0, %v1039
    %v1041 = vrot.slane %v1010, %v1040
    %v1042 = vmul.f32 %v1036, %v1041
    %v1043 = vmul.f32 %v1037, %v1041
    %v1044 = vlaneseq
    %v1045 = vshrl.u32 %v1044, 7
    %v1046 = vsub.s32 0, %v1045
    %v1047 = vrot.slane %v1011, %v1046
    %v1048 = vadd.f32 %v1042, %v1047
    %v1049 = vadd.f32 %v1043, %v1047
    %v1050 = vpack.c.bf16 %v1049, %v1048
    %s1051 = scalar_lea.vmem %s2, 96
    %v1052 = vld [vmem:[%s1051] sm:$0xff]
    %v1053 = vld [vmem:[%s1051 + $0x8] sm:$0xff]
    %v1054 = vld [vmem:[%s1051 + $0x10] sm:$0xff]
    %v1055 = vld [vmem:[%s1051 + $0x18] sm:$0xff]
    %v1056 = vld [vmem:[%s1051 + $0x20] sm:$0xff]
    %v1057 = vld [vmem:[%s1051 + $0x28] sm:$0xff]
    %v1058 = vld [vmem:[%s1051 + $0x30] sm:$0xff]
    %v1059 = vld [vmem:[%s1051 + $0x38] sm:$0xff]
    %v1060 = vld [vmem:[%s1051 + $0x40] sm:$0xff]
    %v1061 = vld [vmem:[%s1051 + $0x48] sm:$0xff]
    %v1062 = vld [vmem:[%s1051 + $0x50] sm:$0xff]
    %v1063 = vld [vmem:[%s1051 + $0x58] sm:$0xff]
    %s1064 = scalar_lea.vmem %s3, 1
    %v1065 = vld [vmem:[%s1064] ss:$2 sm:$0x3f]
    %v1067 = vlaneseq
    %v1068 = vshrl.u32 %v1067, 7
    %v1069 = vsub.s32 0, %v1068
    %v1070 = vrot.slane %v1065, %v1069
    %v1071 = vlaneseq
    %v1072 = vshrl.u32 %v1071, 7
    %v1073 = vsub.s32 1, %v1072
    %v1074 = vrot.slane %v1065, %v1073
    %v1075 = vlaneseq
    %v1076 = vshrl.u32 %v1075, 7
    %v1077 = vsub.s32 2, %v1076
    %v1078 = vrot.slane %v1065, %v1077
    %v1079 = vlaneseq
    %v1080 = vshrl.u32 %v1079, 7
    %v1081 = vsub.s32 3, %v1080
    %v1082 = vrot.slane %v1065, %v1081
    %v1083 = vlaneseq
    %v1084 = vshrl.u32 %v1083, 7
    %v1085 = vsub.s32 4, %v1084
    %v1086 = vrot.slane %v1065, %v1085
    %v1087 = vlaneseq
    %v1088 = vshrl.u32 %v1087, 7
    %v1089 = vsub.s32 5, %v1088
    %v1090 = vrot.slane %v1065, %v1089
    %v1109 = vunpack.c.l.b16 %v1052
    %v1110 = vunpack.c.h.b16 %v1052
    %v1111 = vunpack.c.l.b16 %v1053
    %v1112 = vunpack.c.h.b16 %v1053
    %v1113 = vunpack.c.l.b16 %v1054
    %v1114 = vunpack.c.h.b16 %v1054
    %v1115 = vunpack.c.l.b16 %v1055
    %v1116 = vunpack.c.h.b16 %v1055
    %v1117 = vunpack.c.l.b16 %v1056
    %v1118 = vunpack.c.h.b16 %v1056
    %v1119 = vunpack.c.l.b16 %v1057
    %v1120 = vunpack.c.h.b16 %v1057
    %v1121 = vunpack.c.l.b16 %v1058
    %v1122 = vunpack.c.h.b16 %v1058
    %v1123 = vunpack.c.l.b16 %v1059
    %v1124 = vunpack.c.h.b16 %v1059
    %v1125 = vunpack.c.l.b16 %v1060
    %v1126 = vunpack.c.h.b16 %v1060
    %v1127 = vunpack.c.l.b16 %v1061
    %v1128 = vunpack.c.h.b16 %v1061
    %v1129 = vunpack.c.l.b16 %v1062
    %v1130 = vunpack.c.h.b16 %v1062
    %v1131 = vunpack.c.l.b16 %v1063
    %v1132 = vunpack.c.h.b16 %v1063
    %v1133 = vpack.c.b16 %v1115, %v1109
    %v1134 = vpack.c.b16 %v1116, %v1110
    %v1135 = vpack.c.b16 %v1117, %v1111
    %v1136 = vpack.c.b16 %v1118, %v1112
    %v1137 = vpack.c.b16 %v1119, %v1113
    %v1138 = vpack.c.b16 %v1120, %v1114
    %v1139 = vpack.c.b16 %v1127, %v1121
    %v1140 = vpack.c.b16 %v1128, %v1122
    %v1141 = vpack.c.b16 %v1129, %v1123
    %v1142 = vpack.c.b16 %v1130, %v1124
    %v1143 = vpack.c.b16 %v1131, %v1125
    %v1144 = vpack.c.b16 %v1132, %v1126
    %v1158 = vsel %vm223, %v1050, 0
    %1160 = vmatprep.subr.bf16.mxu0 %v1134
    %1161 = vmatpush1.bf16.msra.mxu0 %v1133
    %1162 = vmatprep.subr.bf16.mxu0 %v1140
    %1163 = vmatpush1.bf16.msra.mxu0 %v1139
    %1164 = vmatprep.subr.bf16.mxu0 0
    %1165 = vmatpush1.bf16.msra.mxu0 0
    %1166 = vmatprep.subr.bf16.mxu0 0
    %1167 = vmatpush1.bf16.msra.mxu0 0
    %1168 = vmatprep.subr.bf16.mxu0 0
    %1169 = vmatpush1.bf16.msra.mxu0 0
    %1170 = vmatprep.subr.bf16.mxu0 0
    %1171 = vmatpush1.bf16.msra.mxu0 0
    %1172 = vmatprep.subr.bf16.mxu0 0
    %1173 = vmatpush1.bf16.msra.mxu0 0
    %1174 = vmatprep.subr.bf16.mxu0 0
    %1175 = vmatpush1.bf16.msra.mxu0 0
    %1176 = vmatprep.subr.bf16.mxu0 0
    %1177 = vmatpush1.bf16.msra.mxu0 0
    %1178 = vmatprep.subr.bf16.mxu0 0
    %1179 = vmatpush1.bf16.msra.mxu0 0
    %1180 = vmatprep.subr.bf16.mxu0 0
    %1181 = vmatpush1.bf16.msra.mxu0 0
    %1182 = vmatprep.subr.bf16.mxu0 0
    %1183 = vmatpush1.bf16.msra.mxu0 0
    %1184 = vmatprep.subr.bf16.mxu0 0
    %1185 = vmatpush1.bf16.msra.mxu0 0
    %1186 = vmatprep.subr.bf16.mxu0 0
    %1187 = vmatpush1.bf16.msra.mxu0 0
    %1188 = vmatprep.subr.bf16.mxu0 0
    %1189 = vmatpush1.bf16.msra.mxu0 0
    %1190 = vmatprep.subr.bf16.mxu0 0
    %1191 = vmatpush1.bf16.msra.mxu0 0
    %1192 = vmatprep.mubr.bf16.mxu0 0
    %1193 = vmatmul.mubr.bf16.gmra.mrb[0].mxu0 %v1158
    %v1194 = vpop.f32.mrb[0].mxu0
    %v1195 = vadd.f32 %v1070, %v1194
    %v1196 = vpop.f32.mrb[0].mxu0
    %v1197 = vadd.f32 %v1074, %v1196
    %v1198 = vpop.f32.mrb[0].mxu0
    %v1199 = vadd.f32 %v1070, %v1198
    %v1200 = vpop.f32.mrb[0].mxu0
    %v1201 = vadd.f32 %v1074, %v1200
    %1202 = vdwg.mxu0
    %1203 = vmatprep.subr.bf16.mxu0 %v1136
    %1204 = vmatpush1.bf16.msra.mxu0 %v1135
    %1205 = vmatprep.subr.bf16.mxu0 %v1142
    %1206 = vmatpush1.bf16.msra.mxu0 %v1141
    %1207 = vmatprep.subr.bf16.mxu0 0
    %1208 = vmatpush1.bf16.msra.mxu0 0
    %1209 = vmatprep.subr.bf16.mxu0 0
    %1210 = vmatpush1.bf16.msra.mxu0 0
    %1211 = vmatprep.subr.bf16.mxu0 0
    %1212 = vmatpush1.bf16.msra.mxu0 0
    %1213 = vmatprep.subr.bf16.mxu0 0
    %1214 = vmatpush1.bf16.msra.mxu0 0
    %1215 = vmatprep.subr.bf16.mxu0 0
    %1216 = vmatpush1.bf16.msra.mxu0 0
    %1217 = vmatprep.subr.bf16.mxu0 0
    %1218 = vmatpush1.bf16.msra.mxu0 0
    %1219 = vmatprep.subr.bf16.mxu0 0
    %1220 = vmatpush1.bf16.msra.mxu0 0
    %1221 = vmatprep.subr.bf16.mxu0 0
    %1222 = vmatpush1.bf16.msra.mxu0 0
    %1223 = vmatprep.subr.bf16.mxu0 0
    %1224 = vmatpush1.bf16.msra.mxu0 0
    %1225 = vmatprep.subr.bf16.mxu0 0
    %1226 = vmatpush1.bf16.msra.mxu0 0
    %1227 = vmatprep.subr.bf16.mxu0 0
    %1228 = vmatpush1.bf16.msra.mxu0 0
    %1229 = vmatprep.subr.bf16.mxu0 0
    %1230 = vmatpush1.bf16.msra.mxu0 0
    %1231 = vmatprep.subr.bf16.mxu0 0
    %1232 = vmatpush1.bf16.msra.mxu0 0
    %1233 = vmatprep.subr.bf16.mxu0 0
    %1234 = vmatpush1.bf16.msra.mxu0 0
    %1235 = vmatprep.mubr.bf16.mxu0 0
    %1236 = vmatmul.mubr.bf16.gmra.mrb[0].mxu0 %v1158
    %v1237 = vpop.f32.mrb[0].mxu0
    %v1238 = vadd.f32 %v1078, %v1237
    %v1239 = vpop.f32.mrb[0].mxu0
    %v1240 = vadd.f32 %v1082, %v1239
    %v1241 = vpop.f32.mrb[0].mxu0
    %v1242 = vadd.f32 %v1078, %v1241
    %v1243 = vpop.f32.mrb[0].mxu0
    %v1244 = vadd.f32 %v1082, %v1243
    %1245 = vdwg.mxu0
    %1246 = vmatprep.subr.bf16.mxu0 %v1138
    %1247 = vmatpush1.bf16.msra.mxu0 %v1137
    %1248 = vmatprep.subr.bf16.mxu0 %v1144
    %1249 = vmatpush1.bf16.msra.mxu0 %v1143
    %1250 = vmatprep.subr.bf16.mxu0 0
    %1251 = vmatpush1.bf16.msra.mxu0 0
    %1252 = vmatprep.subr.bf16.mxu0 0
    %1253 = vmatpush1.bf16.msra.mxu0 0
    %1254 = vmatprep.subr.bf16.mxu0 0
    %1255 = vmatpush1.bf16.msra.mxu0 0
    %1256 = vmatprep.subr.bf16.mxu0 0
    %1257 = vmatpush1.bf16.msra.mxu0 0
    %1258 = vmatprep.subr.bf16.mxu0 0
    %1259 = vmatpush1.bf16.msra.mxu0 0
    %1260 = vmatprep.subr.bf16.mxu0 0
    %1261 = vmatpush1.bf16.msra.mxu0 0
    %1262 = vmatprep.subr.bf16.mxu0 0
    %1263 = vmatpush1.bf16.msra.mxu0 0
    %1264 = vmatprep.subr.bf16.mxu0 0
    %1265 = vmatpush1.bf16.msra.mxu0 0
    %1266 = vmatprep.subr.bf16.mxu0 0
    %1267 = vmatpush1.bf16.msra.mxu0 0
    %1268 = vmatprep.subr.bf16.mxu0 0
    %1269 = vmatpush1.bf16.msra.mxu0 0
    %1270 = vmatprep.subr.bf16.mxu0 0
    %1271 = vmatpush1.bf16.msra.mxu0 0
    %1272 = vmatprep.subr.bf16.mxu0 0
    %1273 = vmatpush1.bf16.msra.mxu0 0
    %1274 = vmatprep.subr.bf16.mxu0 0
    %1275 = vmatpush1.bf16.msra.mxu0 0
    %1276 = vmatprep.subr.bf16.mxu0 0
    %1277 = vmatpush1.bf16.msra.mxu0 0
    %1278 = vmatprep.mubr.bf16.mxu0 0
    %1279 = vmatmul.mubr.bf16.gmra.mrb[0].mxu0 %v1158
    %v1280 = vpop.f32.mrb[0].mxu0
    %v1281 = vadd.f32 %v1086, %v1280
    %v1282 = vpop.f32.mrb[0].mxu0
    %v1283 = vadd.f32 %v1090, %v1282
    %v1284 = vpop.f32.mrb[0].mxu0
    %v1285 = vadd.f32 %v1086, %v1284
    %v1286 = vpop.f32.mrb[0].mxu0
    %v1287 = vadd.f32 %v1090, %v1286
    %1288 = vdwg.mxu0
    %v1289 = vpack.c.bf16 %v1199, %v1195
    %v1290 = vpack.c.bf16 %v1201, %v1197
    %v1291 = vpack.c.bf16 %v1242, %v1238
    %v1292 = vpack.c.bf16 %v1244, %v1240
    %v1293 = vpack.c.bf16 %v1285, %v1281
    %v1294 = vpack.c.bf16 %v1287, %v1283
    %s1295 = scalar_lea.vmem %s4, 128
    %v1296 = vld [vmem:[%s1295] sm:$0xf]
    %v1297 = vld [vmem:[%s1295 + $0x4] sm:$0xf]
    %v1298 = vld [vmem:[%s1295 + $0x8] sm:$0xf]
    %v1299 = vld [vmem:[%s1295 + $0xc] sm:$0xf]
    %v1300 = vld [vmem:[%s1295 + $0x10] sm:$0xf]
    %v1301 = vld [vmem:[%s1295 + $0x14] sm:$0xf]
    %v1302 = vld [vmem:[%s1295 + $0x18] sm:$0xf]
    %v1303 = vld [vmem:[%s1295 + $0x1c] sm:$0xf]
    %v1304 = vld [vmem:[%s1295 + $0x20] sm:$0xf]
    %v1305 = vld [vmem:[%s1295 + $0x24] sm:$0xf]
    %v1306 = vld [vmem:[%s1295 + $0x28] sm:$0xf]
    %v1307 = vld [vmem:[%s1295 + $0x2c] sm:$0xf]
    %v1308 = vld [vmem:[%s1295 + $0x30] sm:$0xf]
    %v1309 = vld [vmem:[%s1295 + $0x34] sm:$0xf]
    %v1310 = vld [vmem:[%s1295 + $0x38] sm:$0xf]
    %v1311 = vld [vmem:[%s1295 + $0x3c] sm:$0xf]
    %v1312 = vld [vmem:[%s1295 + $0x40] sm:$0xf]
    %v1313 = vld [vmem:[%s1295 + $0x44] sm:$0xf]
    %v1314 = vld [vmem:[%s1295 + $0x48] sm:$0xf]
    %v1315 = vld [vmem:[%s1295 + $0x4c] sm:$0xf]
    %v1316 = vld [vmem:[%s1295 + $0x50] sm:$0xf]
    %v1317 = vld [vmem:[%s1295 + $0x54] sm:$0xf]
    %v1318 = vld [vmem:[%s1295 + $0x58] sm:$0xf]
    %v1319 = vld [vmem:[%s1295 + $0x5c] sm:$0xf]
    %v1320 = vld [vmem:[%s1295 + $0x60] sm:$0xf]
    %v1321 = vld [vmem:[%s1295 + $0x64] sm:$0xf]
    %v1322 = vld [vmem:[%s1295 + $0x68] sm:$0xf]
    %v1323 = vld [vmem:[%s1295 + $0x6c] sm:$0xf]
    %v1324 = vld [vmem:[%s1295 + $0x70] sm:$0xf]
    %v1325 = vld [vmem:[%s1295 + $0x74] sm:$0xf]
    %v1326 = vld [vmem:[%s1295 + $0x78] sm:$0xf]
    %v1327 = vld [vmem:[%s1295 + $0x7c] sm:$0xf]
    %1328 = vmatprep.subr.bf16.mxu0 0
    %1329 = vmatpush1.bf16.xpose.msra.mxu0 %v1291
    %1330 = vmatprep.subr.bf16.mxu0 0
    %1331 = vmatpush1.bf16.xpose.msra.mxu0 0
    %1332 = vmatprep.subr.bf16.mxu0 0
    %1333 = vmatpush1.bf16.xpose.msra.mxu0 0
    %1334 = vmatprep.subr.bf16.mxu0 0
    %1335 = vmatpush1.bf16.xpose.msra.mxu0 0
    %1336 = vmatprep.subr.bf16.mxu0 0
    %1337 = vmatpush1.bf16.xpose.msra.mxu0 0
    %1338 = vmatprep.subr.bf16.mxu0 0
    %1339 = vmatpush1.bf16.xpose.msra.mxu0 0
    %1340 = vmatprep.subr.bf16.mxu0 0
    %1341 = vmatpush1.bf16.xpose.msra.mxu0 0
    %1342 = vmatprep.subr.bf16.mxu0 0
    %1343 = vmatpush1.bf16.xpose.msra.mxu0 0
    %1344 = vmatprep.subr.bf16.mxu0 0
    %1345 = vmatpush1.bf16.xpose.msra.mxu0 0
    %1346 = vmatprep.subr.bf16.mxu0 0
    %1347 = vmatpush1.bf16.xpose.msra.mxu0 0
    %1348 = vmatprep.subr.bf16.mxu0 0
    %1349 = vmatpush1.bf16.xpose.msra.mxu0 0
    %1350 = vmatprep.subr.bf16.mxu0 0
    %1351 = vmatpush1.bf16.xpose.msra.mxu0 0
    %1352 = vmatprep.subr.bf16.mxu0 0
    %1353 = vmatpush1.bf16.xpose.msra.mxu0 0
    %1354 = vmatprep.subr.bf16.mxu0 0
    %1355 = vmatpush1.bf16.xpose.msra.mxu0 0
    %1356 = vmatprep.subr.bf16.mxu0 0
    %1357 = vmatpush1.bf16.xpose.msra.mxu0 0
    %1358 = vmatprep.subr.bf16.mxu0 0
    %1359 = vmatpush1.bf16.xpose.msra.mxu0 0
    %1360 = vmatprep.mubr.bf16.mxu0 0
    %1361 = vmatmul.mubr.bf16.gmra.mrb[0].mxu0 %v1289
    %v1362 = vpop.f32.mrb[0].mxu0
    %v1363 = vadd.f32 %v117, %v1362
    %v1364 = vpop.f32.mrb[0].mxu0
    %v1365 = vpop.f32.mrb[0].mxu0
    %v1366 = vadd.f32 %v118, %v1365
    %v1367 = vpop.f32.mrb[0].mxu0
    %1368 = vdwg.mxu0
    %v1369 = vsel %vm435, %v1363, -inf
    %1370 = vmax.xlane.f32.xlu0 %v1369
    %v1371 = vpop.xlane.xlu0 %1370
    %v1372 = vsel %vm435, %v1366, -inf
    %1373 = vmax.xlane.f32.xlu0 %v1372
    %v1374 = vpop.xlane.xlu0 %1373
    %v1375 = vsub.f32 %v1363, %v1371
    %v1376 = vsub.f32 %v1366, %v1374
    %v1377 = vmul.f32 %v1375, 1.442695
    %v1378 = vpow.pop %v1377
    %v1379 = vmul.f32 %v1376, 1.442695
    %v1380 = vpow.pop %v1379
    %v1381 = vsel %vm435, %v1378, 0.0
    %1382 = vadd.xlane.f32.xlu0 %v1381
    %v1383 = vpop.xlane.xlu0 %1382
    %v1384 = vsel %vm435, %v1380, 0.0
    %1385 = vadd.xlane.f32.xlu0 %v1384
    %v1386 = vpop.xlane.xlu0 %1385
    %v1387 = vrcp.pop %v1383
    %v1388 = vrcp.pop %v1386
    %v1389 = vmul.f32 %v1378, %v1387
    %v1390 = vmul.f32 %v1380, %v1388
    %v1391 = vpack.c.bf16 %v1390, %v1389
    %v1393 = vsel %vm435, %v1391, 0
    %1395 = vmatprep.subr.bf16.mxu0 0
    %1396 = vmatpush1.bf16.msra.mxu0 %v1293
    %1397 = vmatprep.subr.bf16.mxu0 0
    %1398 = vmatpush1.bf16.msra.mxu0 0
    %1399 = vmatprep.subr.bf16.mxu0 0
    %1400 = vmatpush1.bf16.msra.mxu0 0
    %1401 = vmatprep.subr.bf16.mxu0 0
    %1402 = vmatpush1.bf16.msra.mxu0 0
    %1403 = vmatprep.subr.bf16.mxu0 0
    %1404 = vmatpush1.bf16.msra.mxu0 0
    %1405 = vmatprep.subr.bf16.mxu0 0
    %1406 = vmatpush1.bf16.msra.mxu0 0
    %1407 = vmatprep.subr.bf16.mxu0 0
    %1408 = vmatpush1.bf16.msra.mxu0 0
    %1409 = vmatprep.subr.bf16.mxu0 0
    %1410 = vmatpush1.bf16.msra.mxu0 0
    %1411 = vmatprep.subr.bf16.mxu0 0
    %1412 = vmatpush1.bf16.msra.mxu0 0
    %1413 = vmatprep.subr.bf16.mxu0 0
    %1414 = vmatpush1.bf16.msra.mxu0 0
    %1415 = vmatprep.subr.bf16.mxu0 0
    %1416 = vmatpush1.bf16.msra.mxu0 0
    %1417 = vmatprep.subr.bf16.mxu0 0
    %1418 = vmatpush1.bf16.msra.mxu0 0
    %1419 = vmatprep.subr.bf16.mxu0 0
    %1420 = vmatpush1.bf16.msra.mxu0 0
    %1421 = vmatprep.subr.bf16.mxu0 0
    %1422 = vmatpush1.bf16.msra.mxu0 0
    %1423 = vmatprep.subr.bf16.mxu0 0
    %1424 = vmatpush1.bf16.msra.mxu0 0
    %1425 = vmatprep.subr.bf16.mxu0 0
    %1426 = vmatpush1.bf16.msra.mxu0 0
    %1427 = vmatprep.mubr.bf16.mxu0 0
    %1428 = vmatmul.mubr.bf16.gmra.mrb[0].mxu0 %v1393
    %v1429 = vpop.f32.mrb[0].mxu0
    %v1430 = vadd.f32 0.0, %v1429
    %v1431 = vpop.f32.mrb[0].mxu0
    %v1432 = vpop.f32.mrb[0].mxu0
    %v1433 = vadd.f32 0.0, %v1432
    %v1434 = vpop.f32.mrb[0].mxu0
    %1435 = vdwg.mxu0
    %v1436 = vpack.c.bf16 %v1433, %v1430
    %1437 = vmatprep.subr.bf16.mxu0 0
    %1438 = vmatpush1.bf16.xpose.msra.mxu0 %v1292
    %1439 = vmatprep.subr.bf16.mxu0 0
    %1440 = vmatpush1.bf16.xpose.msra.mxu0 0
    %1441 = vmatprep.subr.bf16.mxu0 0
    %1442 = vmatpush1.bf16.xpose.msra.mxu0 0
    %1443 = vmatprep.subr.bf16.mxu0 0
    %1444 = vmatpush1.bf16.xpose.msra.mxu0 0
    %1445 = vmatprep.subr.bf16.mxu0 0
    %1446 = vmatpush1.bf16.xpose.msra.mxu0 0
    %1447 = vmatprep.subr.bf16.mxu0 0
    %1448 = vmatpush1.bf16.xpose.msra.mxu0 0
    %1449 = vmatprep.subr.bf16.mxu0 0
    %1450 = vmatpush1.bf16.xpose.msra.mxu0 0
    %1451 = vmatprep.subr.bf16.mxu0 0
    %1452 = vmatpush1.bf16.xpose.msra.mxu0 0
    %1453 = vmatprep.subr.bf16.mxu0 0
    %1454 = vmatpush1.bf16.xpose.msra.mxu0 0
    %1455 = vmatprep.subr.bf16.mxu0 0
    %1456 = vmatpush1.bf16.xpose.msra.mxu0 0
    %1457 = vmatprep.subr.bf16.mxu0 0
    %1458 = vmatpush1.bf16.xpose.msra.mxu0 0
    %1459 = vmatprep.subr.bf16.mxu0 0
    %1460 = vmatpush1.bf16.xpose.msra.mxu0 0
    %1461 = vmatprep.subr.bf16.mxu0 0
    %1462 = vmatpush1.bf16.xpose.msra.mxu0 0
    %1463 = vmatprep.subr.bf16.mxu0 0
    %1464 = vmatpush1.bf16.xpose.msra.mxu0 0
    %1465 = vmatprep.subr.bf16.mxu0 0
    %1466 = vmatpush1.bf16.xpose.msra.mxu0 0
    %1467 = vmatprep.subr.bf16.mxu0 0
    %1468 = vmatpush1.bf16.xpose.msra.mxu0 0
    %1469 = vmatprep.mubr.bf16.mxu0 0
    %1470 = vmatmul.mubr.bf16.gmra.mrb[0].mxu0 %v1290
    %v1471 = vpop.f32.mrb[0].mxu0
    %v1472 = vadd.f32 %v117, %v1471
    %v1473 = vpop.f32.mrb[0].mxu0
    %v1474 = vpop.f32.mrb[0].mxu0
    %v1475 = vadd.f32 %v118, %v1474
    %v1476 = vpop.f32.mrb[0].mxu0
    %1477 = vdwg.mxu0
    %v1478 = vsel %vm435, %v1472, -inf
    %1479 = vmax.xlane.f32.xlu0 %v1478
    %v1480 = vpop.xlane.xlu0 %1479
    %v1481 = vsel %vm435, %v1475, -inf
    %1482 = vmax.xlane.f32.xlu0 %v1481
    %v1483 = vpop.xlane.xlu0 %1482
    %v1484 = vsub.f32 %v1472, %v1480
    %v1485 = vsub.f32 %v1475, %v1483
    %v1486 = vmul.f32 %v1484, 1.442695
    %v1487 = vpow.pop %v1486
    %v1488 = vmul.f32 %v1485, 1.442695
    %v1489 = vpow.pop %v1488
    %v1490 = vsel %vm435, %v1487, 0.0
    %1491 = vadd.xlane.f32.xlu0 %v1490
    %v1492 = vpop.xlane.xlu0 %1491
    %v1493 = vsel %vm435, %v1489, 0.0
    %1494 = vadd.xlane.f32.xlu0 %v1493
    %v1495 = vpop.xlane.xlu0 %1494
    %v1496 = vrcp.pop %v1492
    %v1497 = vrcp.pop %v1495
    %v1498 = vmul.f32 %v1487, %v1496
    %v1499 = vmul.f32 %v1489, %v1497
    %v1500 = vpack.c.bf16 %v1499, %v1498
    %v1502 = vsel %vm435, %v1500, 0
    %1504 = vmatprep.subr.bf16.mxu0 0
    %1505 = vmatpush1.bf16.msra.mxu0 %v1294
    %1506 = vmatprep.subr.bf16.mxu0 0
    %1507 = vmatpush1.bf16.msra.mxu0 0
    %1508 = vmatprep.subr.bf16.mxu0 0
    %1509 = vmatpush1.bf16.msra.mxu0 0
    %1510 = vmatprep.subr.bf16.mxu0 0
    %1511 = vmatpush1.bf16.msra.mxu0 0
    %1512 = vmatprep.subr.bf16.mxu0 0
    %1513 = vmatpush1.bf16.msra.mxu0 0
    %1514 = vmatprep.subr.bf16.mxu0 0
    %1515 = vmatpush1.bf16.msra.mxu0 0
    %1516 = vmatprep.subr.bf16.mxu0 0
    %1517 = vmatpush1.bf16.msra.mxu0 0
    %1518 = vmatprep.subr.bf16.mxu0 0
    %1519 = vmatpush1.bf16.msra.mxu0 0
    %1520 = vmatprep.subr.bf16.mxu0 0
    %1521 = vmatpush1.bf16.msra.mxu0 0
    %1522 = vmatprep.subr.bf16.mxu0 0
    %1523 = vmatpush1.bf16.msra.mxu0 0
    %1524 = vmatprep.subr.bf16.mxu0 0
    %1525 = vmatpush1.bf16.msra.mxu0 0
    %1526 = vmatprep.subr.bf16.mxu0 0
    %1527 = vmatpush1.bf16.msra.mxu0 0
    %1528 = vmatprep.subr.bf16.mxu0 0
    %1529 = vmatpush1.bf16.msra.mxu0 0
    %1530 = vmatprep.subr.bf16.mxu0 0
    %1531 = vmatpush1.bf16.msra.mxu0 0
    %1532 = vmatprep.subr.bf16.mxu0 0
    %1533 = vmatpush1.bf16.msra.mxu0 0
    %1534 = vmatprep.subr.bf16.mxu0 0
    %1535 = vmatpush1.bf16.msra.mxu0 0
    %1536 = vmatprep.mubr.bf16.mxu0 0
    %1537 = vmatmul.mubr.bf16.gmra.mrb[0].mxu0 %v1502
    %v1538 = vpop.f32.mrb[0].mxu0
    %v1539 = vadd.f32 0.0, %v1538
    %v1540 = vpop.f32.mrb[0].mxu0
    %v1541 = vpop.f32.mrb[0].mxu0
    %v1542 = vadd.f32 0.0, %v1541
    %v1543 = vpop.f32.mrb[0].mxu0
    %1544 = vdwg.mxu0
    %v1545 = vpack.c.bf16 %v1542, %v1539
    %v1562 = vunpack.c.l.b16 %v1312
    %v1563 = vunpack.c.l.b16 %v1313
    %v1564 = vunpack.c.l.b16 %v1314
    %v1565 = vunpack.c.l.b16 %v1315
    %v1566 = vunpack.c.l.b16 %v1316
    %v1567 = vunpack.c.l.b16 %v1317
    %v1568 = vunpack.c.l.b16 %v1318
    %v1569 = vunpack.c.l.b16 %v1319
    %v1570 = vunpack.c.l.b16 %v1320
    %v1571 = vunpack.c.l.b16 %v1321
    %v1572 = vunpack.c.l.b16 %v1322
    %v1573 = vunpack.c.l.b16 %v1323
    %v1574 = vunpack.c.l.b16 %v1324
    %v1575 = vunpack.c.l.b16 %v1325
    %v1576 = vunpack.c.l.b16 %v1326
    %v1577 = vunpack.c.l.b16 %v1327
    %v1578 = vpack.c.b16 %v1563, %v1562
    %v1579 = vpack.c.b16 %v1565, %v1564
    %v1580 = vpack.c.b16 %v1567, %v1566
    %v1581 = vpack.c.b16 %v1569, %v1568
    %v1582 = vpack.c.b16 %v1571, %v1570
    %v1583 = vpack.c.b16 %v1573, %v1572
    %v1584 = vpack.c.b16 %v1575, %v1574
    %v1585 = vpack.c.b16 %v1577, %v1576
    %1594 = vmatprep.subr.bf16.mxu0 0
    %1595 = vmatpush1.bf16.msra.mxu0 %v1578
    %1596 = vmatprep.subr.bf16.mxu0 0
    %1597 = vmatpush1.bf16.msra.mxu0 %v1579
    %1598 = vmatprep.subr.bf16.mxu0 0
    %1599 = vmatpush1.bf16.msra.mxu0 %v1580
    %1600 = vmatprep.subr.bf16.mxu0 0
    %1601 = vmatpush1.bf16.msra.mxu0 %v1581
    %1602 = vmatprep.subr.bf16.mxu0 0
    %1603 = vmatpush1.bf16.msra.mxu0 %v1582
    %1604 = vmatprep.subr.bf16.mxu0 0
    %1605 = vmatpush1.bf16.msra.mxu0 %v1583
    %1606 = vmatprep.subr.bf16.mxu0 0
    %1607 = vmatpush1.bf16.msra.mxu0 %v1584
    %1608 = vmatprep.subr.bf16.mxu0 0
    %1609 = vmatpush1.bf16.msra.mxu0 %v1585
    %1610 = vmatprep.subr.bf16.mxu0 0
    %1611 = vmatpush1.bf16.msra.mxu0 0
    %1612 = vmatprep.subr.bf16.mxu0 0
    %1613 = vmatpush1.bf16.msra.mxu0 0
    %1614 = vmatprep.subr.bf16.mxu0 0
    %1615 = vmatpush1.bf16.msra.mxu0 0
    %1616 = vmatprep.subr.bf16.mxu0 0
    %1617 = vmatpush1.bf16.msra.mxu0 0
    %1618 = vmatprep.subr.bf16.mxu0 0
    %1619 = vmatpush1.bf16.msra.mxu0 0
    %1620 = vmatprep.subr.bf16.mxu0 0
    %1621 = vmatpush1.bf16.msra.mxu0 0
    %1622 = vmatprep.subr.bf16.mxu0 0
    %1623 = vmatpush1.bf16.msra.mxu0 0
    %1624 = vmatprep.subr.bf16.mxu0 0
    %1625 = vmatpush1.bf16.msra.mxu0 0
    %1626 = vmatprep.mubr.bf16.mxu0 0
    %1627 = vmatmul.mubr.bf16.gmra.mrb[0].mxu0 %v1545
    %v1628 = vpop.f32.mrb[0].mxu0
    %v1629 = vadd.f32 0.0, %v1628
    %v1630 = vpop.f32.mrb[0].mxu0
    %v1631 = vpop.f32.mrb[0].mxu0
    %v1632 = vadd.f32 0.0, %v1631
    %v1633 = vpop.f32.mrb[0].mxu0
    %1634 = vdwg.mxu0
    %v1651 = vunpack.c.l.b16 %v1296
    %v1652 = vunpack.c.l.b16 %v1297
    %v1653 = vunpack.c.l.b16 %v1298
    %v1654 = vunpack.c.l.b16 %v1299
    %v1655 = vunpack.c.l.b16 %v1300
    %v1656 = vunpack.c.l.b16 %v1301
    %v1657 = vunpack.c.l.b16 %v1302
    %v1658 = vunpack.c.l.b16 %v1303
    %v1659 = vunpack.c.l.b16 %v1304
    %v1660 = vunpack.c.l.b16 %v1305
    %v1661 = vunpack.c.l.b16 %v1306
    %v1662 = vunpack.c.l.b16 %v1307
    %v1663 = vunpack.c.l.b16 %v1308
    %v1664 = vunpack.c.l.b16 %v1309
    %v1665 = vunpack.c.l.b16 %v1310
    %v1666 = vunpack.c.l.b16 %v1311
    %v1667 = vpack.c.b16 %v1652, %v1651
    %v1668 = vpack.c.b16 %v1654, %v1653
    %v1669 = vpack.c.b16 %v1656, %v1655
    %v1670 = vpack.c.b16 %v1658, %v1657
    %v1671 = vpack.c.b16 %v1660, %v1659
    %v1672 = vpack.c.b16 %v1662, %v1661
    %v1673 = vpack.c.b16 %v1664, %v1663
    %v1674 = vpack.c.b16 %v1666, %v1665
    %1683 = vmatprep.subr.bf16.mxu0 0
    %1684 = vmatpush1.bf16.msra.mxu0 %v1667
    %1685 = vmatprep.subr.bf16.mxu0 0
    %1686 = vmatpush1.bf16.msra.mxu0 %v1668
    %1687 = vmatprep.subr.bf16.mxu0 0
    %1688 = vmatpush1.bf16.msra.mxu0 %v1669
    %1689 = vmatprep.subr.bf16.mxu0 0
    %1690 = vmatpush1.bf16.msra.mxu0 %v1670
    %1691 = vmatprep.subr.bf16.mxu0 0
    %1692 = vmatpush1.bf16.msra.mxu0 %v1671
    %1693 = vmatprep.subr.bf16.mxu0 0
    %1694 = vmatpush1.bf16.msra.mxu0 %v1672
    %1695 = vmatprep.subr.bf16.mxu0 0
    %1696 = vmatpush1.bf16.msra.mxu0 %v1673
    %1697 = vmatprep.subr.bf16.mxu0 0
    %1698 = vmatpush1.bf16.msra.mxu0 %v1674
    %1699 = vmatprep.subr.bf16.mxu0 0
    %1700 = vmatpush1.bf16.msra.mxu0 0
    %1701 = vmatprep.subr.bf16.mxu0 0
    %1702 = vmatpush1.bf16.msra.mxu0 0
    %1703 = vmatprep.subr.bf16.mxu0 0
    %1704 = vmatpush1.bf16.msra.mxu0 0
    %1705 = vmatprep.subr.bf16.mxu0 0
    %1706 = vmatpush1.bf16.msra.mxu0 0
    %1707 = vmatprep.subr.bf16.mxu0 0
    %1708 = vmatpush1.bf16.msra.mxu0 0
    %1709 = vmatprep.subr.bf16.mxu0 0
    %1710 = vmatpush1.bf16.msra.mxu0 0
    %1711 = vmatprep.subr.bf16.mxu0 0
    %1712 = vmatpush1.bf16.msra.mxu0 0
    %1713 = vmatprep.subr.bf16.mxu0 0
    %1714 = vmatpush1.bf16.msra.mxu0 0
    %1715 = vmatprep.mubr.bf16.mxu0 0
    %1716 = vmatmul.mubr.bf16.gmra.mrb[0].mxu0 %v1436
    %v1717 = vpop.f32.mrb[0].mxu0
    %v1718 = vadd.f32 %v1629, %v1717
    %v1719 = vpop.f32.mrb[0].mxu0
    %v1720 = vpop.f32.mrb[0].mxu0
    %v1721 = vadd.f32 %v1632, %v1720
    %v1722 = vpop.f32.mrb[0].mxu0
    %1723 = vdwg.mxu0
    %v1724 = vld [vmem:[%s5 + $0x1] sm:$0x1]
    %v1725 = vlaneseq
    %v1726 = vshrl.u32 %v1725, 7
    %v1727 = vsub.s32 0, %v1726
    %v1728 = vrot.slane %v1724, %v1727
    %v1729 = vadd.f32 %v1718, %v1728
    %v1730 = vadd.f32 %v1721, %v1728
    %v1731 = vadd.f32 %v1048, %v1729
    %v1732 = vadd.f32 %v1049, %v1730
    %v1733 = vld [vmem:[%s6 + $0x1] sm:$0x1]
    %v1734 = vld [vmem:[%s7 + $0x1] sm:$0x1]
    %v1735 = vsel %vm223, %v1731, 0.0
    %1736 = vadd.xlane.f32.xlu0 %v1735
    %v1737 = vpop.xlane.xlu0 %1736
    %v1738 = vsel %vm223, %v1732, 0.0
    %1739 = vadd.xlane.f32.xlu0 %v1738
    %v1740 = vpop.xlane.xlu0 %1739
    %v1741 = vmul.f32 %v1737, %v808
    %v1742 = vmul.f32 %v1740, %v808
    %v1743 = vsub.f32 %v1731, %v1741
    %v1744 = vsub.f32 %v1732, %v1742
    %v1745 = vmul.f32 %v1743, %v1743
    %v1746 = vmul.f32 %v1744, %v1744
    %v1747 = vsel %vm223, %v1745, 0.0
    %1748 = vadd.xlane.f32.xlu0 %v1747
    %v1749 = vpop.xlane.xlu0 %1748
    %v1750 = vsel %vm223, %v1746, 0.0
    %1751 = vadd.xlane.f32.xlu0 %v1750
    %v1752 = vpop.xlane.xlu0 %1751
    %v1753 = vmul.f32 %v1749, %v808
    %v1754 = vmul.f32 %v1752, %v808
    %v1755 = vadd.f32 %v1753, 1e-12
    %v1756 = vadd.f32 %v1754, 1e-12
    %v1757 = vrsqrt.pop %v1755
    %v1758 = vrsqrt.pop %v1756
    %v1759 = vmul.f32 %v1743, %v1757
    %v1760 = vmul.f32 %v1744, %v1758
    %v1761 = vlaneseq
    %v1762 = vshrl.u32 %v1761, 7
    %v1763 = vsub.s32 0, %v1762
    %v1764 = vrot.slane %v1733, %v1763
    %v1765 = vmul.f32 %v1759, %v1764
    %v1766 = vmul.f32 %v1760, %v1764
    %v1767 = vlaneseq
    %v1768 = vshrl.u32 %v1767, 7
    %v1769 = vsub.s32 0, %v1768
    %v1770 = vrot.slane %v1734, %v1769
    %v1771 = vadd.f32 %v1765, %v1770
    %v1772 = vadd.f32 %v1766, %v1770
    %v1773 = vpack.c.bf16 %v1772, %v1771
    %s1774 = scalar_lea.vmem %s8, 16
    %v1775 = vld [vmem:[%s1774] sm:$0xf]
    %v1776 = vld [vmem:[%s1774 + $0x4] sm:$0xf]
    %v1777 = vld [vmem:[%s1774 + $0x8] sm:$0xf]
    %v1778 = vld [vmem:[%s1774 + $0xc] sm:$0xf]
    %v1779 = vld [vmem:[%s9 + $0x1] sm:$0x1]
    %v1780 = vlaneseq
    %v1781 = vshrl.u32 %v1780, 7
    %v1782 = vsub.s32 0, %v1781
    %v1783 = vrot.slane %v1779, %v1782
    %v1788 = vunpack.c.l.b16 %v1775
    %v1789 = vunpack.c.l.b16 %v1776
    %v1790 = vunpack.c.l.b16 %v1777
    %v1791 = vunpack.c.l.b16 %v1778
    %v1792 = vpack.c.b16 %v1789, %v1788
    %v1793 = vpack.c.b16 %v1791, %v1790
    %v1797 = vsel %vm223, %v1773, 0
    %1799 = vmatprep.subr.bf16.mxu0 0
    %1800 = vmatpush1.bf16.msra.mxu0 %v1792
    %1801 = vmatprep.subr.bf16.mxu0 0
    %1802 = vmatpush1.bf16.msra.mxu0 %v1793
    %1803 = vmatprep.subr.bf16.mxu0 0
    %1804 = vmatpush1.bf16.msra.mxu0 0
    %1805 = vmatprep.subr.bf16.mxu0 0
    %1806 = vmatpush1.bf16.msra.mxu0 0
    %1807 = vmatprep.subr.bf16.mxu0 0
    %1808 = vmatpush1.bf16.msra.mxu0 0
    %1809 = vmatprep.subr.bf16.mxu0 0
    %1810 = vmatpush1.bf16.msra.mxu0 0
    %1811 = vmatprep.subr.bf16.mxu0 0
    %1812 = vmatpush1.bf16.msra.mxu0 0
    %1813 = vmatprep.subr.bf16.mxu0 0
    %1814 = vmatpush1.bf16.msra.mxu0 0
    %1815 = vmatprep.subr.bf16.mxu0 0
    %1816 = vmatpush1.bf16.msra.mxu0 0
    %1817 = vmatprep.subr.bf16.mxu0 0
    %1818 = vmatpush1.bf16.msra.mxu0 0
    %1819 = vmatprep.subr.bf16.mxu0 0
    %1820 = vmatpush1.bf16.msra.mxu0 0
    %1821 = vmatprep.subr.bf16.mxu0 0
    %1822 = vmatpush1.bf16.msra.mxu0 0
    %1823 = vmatprep.subr.bf16.mxu0 0
    %1824 = vmatpush1.bf16.msra.mxu0 0
    %1825 = vmatprep.subr.bf16.mxu0 0
    %1826 = vmatpush1.bf16.msra.mxu0 0
    %1827 = vmatprep.subr.bf16.mxu0 0
    %1828 = vmatpush1.bf16.msra.mxu0 0
    %1829 = vmatprep.subr.bf16.mxu0 0
    %1830 = vmatpush1.bf16.msra.mxu0 0
    %1831 = vmatprep.mubr.bf16.mxu0 0
    %1832 = vmatmul.mubr.bf16.gmra.mrb[0].mxu0 %v1797
    %v1833 = vpop.f32.mrb[0].mxu0
    %v1834 = vadd.f32 %v1783, %v1833
    %v1835 = vpop.f32.mrb[0].mxu0
    %v1836 = vpop.f32.mrb[0].mxu0
    %v1837 = vadd.f32 %v1783, %v1836
    %v1838 = vpop.f32.mrb[0].mxu0
    %1839 = vdwg.mxu0
    %v1840 = vmul.f32 %v1834, %v1834
    %v1841 = vmul.f32 %v1837, %v1837
    %v1842 = vmul.f32 %v1834, %v1840
    %v1843 = vmul.f32 %v1837, %v1841
    %v1844 = vmul.f32 %v1842, 0.044715
    %v1845 = vmul.f32 %v1843, 0.044715
    %v1846 = vadd.f32 %v1834, %v1844
    %v1847 = vadd.f32 %v1837, %v1845
    %v1848 = vmul.f32 %v1846, 0.7978846
    %v1849 = vmul.f32 %v1847, 0.7978846
    %v1850 = vtanh.pop %v1848
    %v1851 = vtanh.pop %v1849
    %v1852 = vadd.f32 %v1850, 1.0
    %v1853 = vadd.f32 %v1851, 1.0
    %v1854 = vmul.f32 %v1852, 0.5
    %v1855 = vmul.f32 %v1853, 0.5
    %v1856 = vmul.f32 %v1834, %v1854
    %v1857 = vmul.f32 %v1837, %v1855
    %v1858 = vpack.c.bf16 %v1857, %v1856
    %s1859 = scalar_lea.vmem %s10, 32
    %v1860 = vld [vmem:[%s1859] sm:$0xf]
    %v1861 = vld [vmem:[%s1859 + $0x4] sm:$0xf]
    %v1862 = vld [vmem:[%s1859 + $0x8] sm:$0xf]
    %v1863 = vld [vmem:[%s1859 + $0xc] sm:$0xf]
    %v1864 = vld [vmem:[%s1859 + $0x10] sm:$0xf]
    %v1865 = vld [vmem:[%s1859 + $0x14] sm:$0xf]
    %v1866 = vld [vmem:[%s1859 + $0x18] sm:$0xf]
    %v1867 = vld [vmem:[%s1859 + $0x1c] sm:$0xf]
    %v1868 = vld [vmem:[%s11 + $0x1] sm:$0x1]
    %v1869 = vlaneseq
    %v1870 = vshrl.u32 %v1869, 7
    %v1871 = vsub.s32 0, %v1870
    %v1872 = vrot.slane %v1868, %v1871
    %v1881 = vunpack.c.l.b16 %v1860
    %v1882 = vunpack.c.l.b16 %v1861
    %v1883 = vunpack.c.l.b16 %v1862
    %v1884 = vunpack.c.l.b16 %v1863
    %v1885 = vunpack.c.l.b16 %v1864
    %v1886 = vunpack.c.l.b16 %v1865
    %v1887 = vunpack.c.l.b16 %v1866
    %v1888 = vunpack.c.l.b16 %v1867
    %v1889 = vpack.c.b16 %v1882, %v1881
    %v1890 = vpack.c.b16 %v1884, %v1883
    %v1891 = vpack.c.b16 %v1886, %v1885
    %v1892 = vpack.c.b16 %v1888, %v1887
    %v1898 = vsel %vm963, %v1858, 0
    %1900 = vmatprep.subr.bf16.mxu0 0
    %1901 = vmatpush1.bf16.msra.mxu0 %v1889
    %1902 = vmatprep.subr.bf16.mxu0 0
    %1903 = vmatpush1.bf16.msra.mxu0 %v1890
    %1904 = vmatprep.subr.bf16.mxu0 0
    %1905 = vmatpush1.bf16.msra.mxu0 %v1891
    %1906 = vmatprep.subr.bf16.mxu0 0
    %1907 = vmatpush1.bf16.msra.mxu0 %v1892
    %1908 = vmatprep.subr.bf16.mxu0 0
    %1909 = vmatpush1.bf16.msra.mxu0 0
    %1910 = vmatprep.subr.bf16.mxu0 0
    %1911 = vmatpush1.bf16.msra.mxu0 0
    %1912 = vmatprep.subr.bf16.mxu0 0
    %1913 = vmatpush1.bf16.msra.mxu0 0
    %1914 = vmatprep.subr.bf16.mxu0 0
    %1915 = vmatpush1.bf16.msra.mxu0 0
    %1916 = vmatprep.subr.bf16.mxu0 0
    %1917 = vmatpush1.bf16.msra.mxu0 0
    %1918 = vmatprep.subr.bf16.mxu0 0
    %1919 = vmatpush1.bf16.msra.mxu0 0
    %1920 = vmatprep.subr.bf16.mxu0 0
    %1921 = vmatpush1.bf16.msra.mxu0 0
    %1922 = vmatprep.subr.bf16.mxu0 0
    %1923 = vmatpush1.bf16.msra.mxu0 0
    %1924 = vmatprep.subr.bf16.mxu0 0
    %1925 = vmatpush1.bf16.msra.mxu0 0
    %1926 = vmatprep.subr.bf16.mxu0 0
    %1927 = vmatpush1.bf16.msra.mxu0 0
    %1928 = vmatprep.subr.bf16.mxu0 0
    %1929 = vmatpush1.bf16.msra.mxu0 0
    %1930 = vmatprep.subr.bf16.mxu0 0
    %1931 = vmatpush1.bf16.msra.mxu0 0
    %1932 = vmatprep.mubr.bf16.mxu0 0
    %1933 = vmatmul.mubr.bf16.gmra.mrb[0].mxu0 %v1898
    %v1934 = vpop.f32.mrb[0].mxu0
    %v1935 = vadd.f32 %v1872, %v1934
    %v1936 = vpop.f32.mrb[0].mxu0
    %v1937 = vpop.f32.mrb[0].mxu0
    %v1938 = vadd.f32 %v1872, %v1937
    %v1939 = vpop.f32.mrb[0].mxu0
    %1940 = vdwg.mxu0
    %v1941 = vadd.f32 %v1771, %v1935
    %v1942 = vadd.f32 %v1772, %v1938
    %v1943 = vld [vmem:[%s12 + $0x1] sm:$0x1]
    %v1944 = vld [vmem:[%s13 + $0x1] sm:$0x1]
    %v1945 = vsel %vm223, %v1941, 0.0
    %1946 = vadd.xlane.f32.xlu0 %v1945
    %v1947 = vpop.xlane.xlu0 %1946
    %v1948 = vsel %vm223, %v1942, 0.0
    %1949 = vadd.xlane.f32.xlu0 %v1948
    %v1950 = vpop.xlane.xlu0 %1949
    %v1951 = vmul.f32 %v1947, %v808
    %v1952 = vmul.f32 %v1950, %v808
    %v1953 = vsub.f32 %v1941, %v1951
    %v1954 = vsub.f32 %v1942, %v1952
    %v1955 = vmul.f32 %v1953, %v1953
    %v1956 = vmul.f32 %v1954, %v1954
    %v1957 = vsel %vm223, %v1955, 0.0
    %1958 = vadd.xlane.f32.xlu0 %v1957
    %v1959 = vpop.xlane.xlu0 %1958
    %v1960 = vsel %vm223, %v1956, 0.0
    %1961 = vadd.xlane.f32.xlu0 %v1960
    %v1962 = vpop.xlane.xlu0 %1961
    %v1963 = vmul.f32 %v1959, %v808
    %v1964 = vmul.f32 %v1962, %v808
    %v1965 = vadd.f32 %v1963, 1e-12
    %v1966 = vadd.f32 %v1964, 1e-12
    %v1967 = vrsqrt.pop %v1965
    %v1968 = vrsqrt.pop %v1966
    %v1969 = vmul.f32 %v1953, %v1967
    %v1970 = vmul.f32 %v1954, %v1968
    %v1971 = vlaneseq
    %v1972 = vshrl.u32 %v1971, 7
    %v1973 = vsub.s32 0, %v1972
    %v1974 = vrot.slane %v1943, %v1973
    %v1975 = vmul.f32 %v1969, %v1974
    %v1976 = vmul.f32 %v1970, %v1974
    %v1977 = vlaneseq
    %v1978 = vshrl.u32 %v1977, 7
    %v1979 = vsub.s32 0, %v1978
    %v1980 = vrot.slane %v1944, %v1979
    %v1981 = vadd.f32 %v1975, %v1980
    %v1982 = vadd.f32 %v1976, %v1980
    %v1983 = vpack.c.bf16 %v1982, %v1981
    %v1984 = vld [vmem:[%s14] sm:$0xf]
    %v1985 = vld [vmem:[%s14 + $0x4] sm:$0xf]
    %v1986 = vld [vmem:[%s14 + $0x8] sm:$0xf]
    %v1987 = vld [vmem:[%s14 + $0xc] sm:$0xf]
    %v1988 = vld [vmem:[%s15] sm:$0x1]
    %v1990 = vlaneseq
    %v1991 = vshrl.u32 %v1990, 7
    %v1992 = vsub.s32 0, %v1991
    %v1993 = vrot.slane %v1988, %v1992
    %v1999 = vunpack.c.l.b16 %v1984
    %v2000 = vunpack.c.l.b16 %v1985
    %v2001 = vunpack.c.l.b16 %v1986
    %v2002 = vunpack.c.l.b16 %v1987
    %v2003 = vpack.c.b16 %v2000, %v1999
    %v2004 = vpack.c.b16 %v2002, %v2001
    %v2008 = vsel %vm223, %v1983, 0
    %2010 = vmatprep.subr.bf16.mxu0 0
    %2011 = vmatpush1.bf16.msra.mxu0 %v2003
    %2012 = vmatprep.subr.bf16.mxu0 0
    %2013 = vmatpush1.bf16.msra.mxu0 %v2004
    %2014 = vmatprep.subr.bf16.mxu0 0
    %2015 = vmatpush1.bf16.msra.mxu0 0
    %2016 = vmatprep.subr.bf16.mxu0 0
    %2017 = vmatpush1.bf16.msra.mxu0 0
    %2018 = vmatprep.subr.bf16.mxu0 0
    %2019 = vmatpush1.bf16.msra.mxu0 0
    %2020 = vmatprep.subr.bf16.mxu0 0
    %2021 = vmatpush1.bf16.msra.mxu0 0
    %2022 = vmatprep.subr.bf16.mxu0 0
    %2023 = vmatpush1.bf16.msra.mxu0 0
    %2024 = vmatprep.subr.bf16.mxu0 0
    %2025 = vmatpush1.bf16.msra.mxu0 0
    %2026 = vmatprep.subr.bf16.mxu0 0
    %2027 = vmatpush1.bf16.msra.mxu0 0
    %2028 = vmatprep.subr.bf16.mxu0 0
    %2029 = vmatpush1.bf16.msra.mxu0 0
    %2030 = vmatprep.subr.bf16.mxu0 0
    %2031 = vmatpush1.bf16.msra.mxu0 0
    %2032 = vmatprep.subr.bf16.mxu0 0
    %2033 = vmatpush1.bf16.msra.mxu0 0
    %2034 = vmatprep.subr.bf16.mxu0 0
    %2035 = vmatpush1.bf16.msra.mxu0 0
    %2036 = vmatprep.subr.bf16.mxu0 0
    %2037 = vmatpush1.bf16.msra.mxu0 0
    %2038 = vmatprep.subr.bf16.mxu0 0
    %2039 = vmatpush1.bf16.msra.mxu0 0
    %2040 = vmatprep.subr.bf16.mxu0 0
    %2041 = vmatpush1.bf16.msra.mxu0 0
    %2042 = vmatprep.mubr.bf16.mxu0 0
    %2043 = vmatmul.mubr.bf16.gmra.mrb[0].mxu0 %v2008
    %v2044 = vpop.f32.mrb[0].mxu0
    %v2045 = vadd.f32 %v1993, %v2044
    %v2046 = vpop.f32.mrb[0].mxu0
    %v2047 = vpop.f32.mrb[0].mxu0
    %v2048 = vadd.f32 %v1993, %v2047
    %v2049 = vpop.f32.mrb[0].mxu0
    %2050 = vdwg.mxu0
    %v2051 = vtanh.pop %v2045
    %v2052 = vtanh.pop %v2048
    %v2053 = vpack.c.bf16 %v2052, %v2051
    %v2054 = vld [vmem:[%s16] sm:$0xf]
    %v2055 = vld [vmem:[%s16 + $0x4] sm:$0xf]
    %v2056 = vld [vmem:[%s16 + $0x8] sm:$0xf]
    %v2057 = vld [vmem:[%s16 + $0xc] sm:$0xf]
    %v2058 = vld [vmem:[%s17] sm:$0x1]
    %v2060 = vlaneseq
    %v2061 = vshrl.u32 %v2060, 7
    %v2062 = vsub.s32 0, %v2061
    %v2063 = vrot.slane %v2058, %v2062
    %v2069 = vunpack.c.l.b16 %v2054
    %v2070 = vunpack.c.l.b16 %v2055
    %v2071 = vunpack.c.l.b16 %v2056
    %v2072 = vunpack.c.l.b16 %v2057
    %v2073 = vpack.c.b16 %v2070, %v2069
    %v2074 = vpack.c.b16 %v2072, %v2071
    %v2078 = vsel %vm223, %v2053, 0
    %2080 = vmatprep.subr.bf16.mxu0 0
    %2081 = vmatpush1.bf16.msra.mxu0 %v2073
    %2082 = vmatprep.subr.bf16.mxu0 0
    %2083 = vmatpush1.bf16.msra.mxu0 %v2074
    %2084 = vmatprep.subr.bf16.mxu0 0
    %2085 = vmatpush1.bf16.msra.mxu0 0
    %2086 = vmatprep.subr.bf16.mxu0 0
    %2087 = vmatpush1.bf16.msra.mxu0 0
    %2088 = vmatprep.subr.bf16.mxu0 0
    %2089 = vmatpush1.bf16.msra.mxu0 0
    %2090 = vmatprep.subr.bf16.mxu0 0
    %2091 = vmatpush1.bf16.msra.mxu0 0
    %2092 = vmatprep.subr.bf16.mxu0 0
    %2093 = vmatpush1.bf16.msra.mxu0 0
    %2094 = vmatprep.subr.bf16.mxu0 0
    %2095 = vmatpush1.bf16.msra.mxu0 0
    %2096 = vmatprep.subr.bf16.mxu0 0
    %2097 = vmatpush1.bf16.msra.mxu0 0
    %2098 = vmatprep.subr.bf16.mxu0 0
    %2099 = vmatpush1.bf16.msra.mxu0 0
    %2100 = vmatprep.subr.bf16.mxu0 0
    %2101 = vmatpush1.bf16.msra.mxu0 0
    %2102 = vmatprep.subr.bf16.mxu0 0
    %2103 = vmatpush1.bf16.msra.mxu0 0
    %2104 = vmatprep.subr.bf16.mxu0 0
    %2105 = vmatpush1.bf16.msra.mxu0 0
    %2106 = vmatprep.subr.bf16.mxu0 0
    %2107 = vmatpush1.bf16.msra.mxu0 0
    %2108 = vmatprep.subr.bf16.mxu0 0
    %2109 = vmatpush1.bf16.msra.mxu0 0
    %2110 = vmatprep.subr.bf16.mxu0 0
    %2111 = vmatpush1.bf16.msra.mxu0 0
    %2112 = vmatprep.mubr.bf16.mxu0 0
    %2113 = vmatmul.mubr.bf16.gmra.mrb[0].mxu0 %v2078
    %v2114 = vpop.f32.mrb[0].mxu0
    %v2115 = vadd.f32 %v2063, %v2114
    %v2116 = vpop.f32.mrb[0].mxu0
    %v2117 = vpop.f32.mrb[0].mxu0
    %v2118 = vadd.f32 %v2063, %v2117
    %v2119 = vpop.f32.mrb[0].mxu0
    %2120 = vdwg.mxu0
    %2121 = vst [vmem:[#allocation5] sm:$0xff] %v2115
    %2122 = vst [vmem:[#allocation5 + $0x8] sm:$0xff] %v2118
    // Predicated region
    $region78: #{tpu_custom_call.1} parent=1 // pred_check
      _
    $region79: #{tpu_custom_call.1} parent=1 // pred_check_branch
      %2124 = sbr.rel (0) target = $region81
    $region80: #{tpu_custom_call.1} parent=1 // pred_region
      %s2126 = ssub.s32 256, 256
      %2127 = vsyncadd [#allocation3], %s2126
      %s2128 = sshll.u32 [#allocation5], 4
      %s2129 = int_to_ptr.vmem [resolvable:$true] %s2128
      %2134 = dma.vmem_to_hbm [thread:$0]  %s2129, 256, %s18, [#allocation3], 128, 128, 8
    $region81: #{tpu_custom_call.1} parent=1 // pred_fallthru
      _
    // Predicated region
    $region82: #{tpu_custom_call.1} parent=1 // pred_check
      _
    $region83: #{tpu_custom_call.1} parent=1 // pred_check_branch
      %2136 = sbr.rel (0) target = $region85
    $region84: #{tpu_custom_call.1} parent=1 // pred_region
      %2137 = dma.done [#allocation3], 256
    $region85: #{tpu_custom_call.1} parent=1 // pred_fallthru
      _
    %2138 = vsyncpa [#allocation3], 1
    %2139 = vsyncpa [#allocation4], 1

</llo_original>
